<compile_context>
chip_gen: v6e
topology: v6e:2x2x1
jax: 0.10.0
libtpu: 0.0.40
codegen_flags: <defaults>
</compile_context>

<pallas_src>
import functools

import jax
import jax.numpy as jnp
from jax.experimental import pallas as pl
from jax.experimental.pallas import tpu as pltpu


# ---------------------------------------------------------------------------
# The fused kernel (one grid step == one batch element), channels-first layout
# ---------------------------------------------------------------------------

def _munet_kernel(hsi_ref, lpad_ref, slab_ref, ab_ref, rc_ref, ypad_ref,
                  *, H, W, PADL, offs):
    f32 = jnp.float32
    HW = H * W

    def blk(name):
        off, r, c = offs[name]
        return slab_ref[off:off + r, 0:c]

    def dense_t(x, wname, bname=None, relu=False):
        # x: (Cin, HW); weight block: (Cout, Cin); bias block: (Cout, 1)
        y = jnp.dot(blk(wname), x, preferred_element_type=f32)
        if bname is not None:
            y = y + blk(bname)
        if relu:
            y = jnp.maximum(y, 0.0)
        return y

    # Column-validity masks for dx = -1 / +1 (dx = 0 needs none); computed once
    # and shared by both 3x3 convs.
    col = jax.lax.broadcasted_iota(jnp.int32, (1, HW), 1) % W
    dx_mask = {-1: col >= 1, 0: None, 1: col <= W - 2}

    def conv3x3_relu(padded_ref, wname, bname):
        # padded_ref: (Cin, HW + 2*PADL), zero lanes outside [PADL, PADL+HW).
        taps = []
        for t in range(9):
            dy, dx = t // 3 - 1, t % 3 - 1
            start = PADL + dy * W + dx
            tap = padded_ref[:, start:start + HW]          # (Cin, HW)
            if dx_mask[dx] is not None:
                tap = jnp.where(dx_mask[dx], tap, 0.0)
            taps.append(tap)
        im2col = jnp.concatenate(taps, axis=0)             # (9*Cin, HW)
        y = jnp.dot(blk(wname), im2col, preferred_element_type=f32) + blk(bname)
        return jnp.maximum(y, 0.0)

    # ---- fc_hsi: three fused 1x1 convs (BN folded) ----
    x = hsi_ref[...]                                       # (band, HW)
    x = dense_t(x, "wh1", "bh1", relu=True)
    x = dense_t(x, "wh2", "bh2", relu=True)
    hsi_feat = dense_t(x, "wh3", "bh3")                    # (C, HW)

    # ---- fc_lidar: 3x3 conv -> 3x3 conv -> 1x1 conv ----
    y = conv3x3_relu(lpad_ref, "wl1", "bl1")               # (L2, HW)
    L2 = y.shape[0]
    # Zero only the halo lanes (every step: scratch is per-core / persists).
    halo = jnp.zeros((L2, PADL), f32)
    ypad_ref[:, 0:PADL] = halo
    ypad_ref[:, PADL + HW:PADL + HW + PADL] = halo
    ypad_ref[:, PADL:PADL + HW] = y
    y = conv3x3_relu(ypad_ref, "wl2", "bl2")               # (L4, HW)
    lidar_feat = dense_t(y, "wl3", "bl3")                  # (C, HW)

    # ---- SE attention: squeeze over space, excite on VPU/XLU (no MXU) ----
    se = jnp.mean(lidar_feat, axis=1, keepdims=True)                        # (C, 1)
    se1 = jnp.sum(se * blk("wse1a"), axis=0, keepdims=True) + blk("bse1")   # (1, Cse)
    se1 = jnp.maximum(se1, 0.0)
    se2 = jnp.sum(blk("wse2a") * se1, axis=1, keepdims=True) + blk("bse2")  # (C, 1)
    se2 = jax.nn.sigmoid(se2)

    # ---- fuse -> fc_fused -> decoder ----
    fused = hsi_feat * (lidar_feat * se2)                  # (C, HW)
    f = dense_t(fused, "wf1", "bf1", relu=True)            # (Cf, HW)
    ab = dense_t(f, "wf2", "bf2")                          # (C, HW)
    rc = jnp.maximum(
        jnp.dot(blk("wd"), ab, preferred_element_type=f32), 0.0)            # (band, HW)

    ab_ref[...] = ab
    rc_ref[...] = rc


# ---------------------------------------------------------------------------
# Parameter packing: all weights/biases (pre-transposed for the channels-first
# layout, BN already folded) in ONE VMEM slab; static row offsets for slicing.
# ---------------------------------------------------------------------------

def _pack_params(p):
    f32 = jnp.float32

    def t(x):
        return jnp.asarray(x, f32).T

    def flat_conv(w):                       # (9, cin, cout) -> (cout, 9*cin)
        return jnp.asarray(w, f32).reshape(-1, w.shape[-1]).T

    blocks = [
        ("wh1", t(p["wh1"])),  ("bh1", t(p["bh1"])),
        ("wh2", t(p["wh2"])),  ("bh2", t(p["bh2"])),
        ("wh3", t(p["wh3"])),  ("bh3", t(p["bh3"])),
        ("wl1", flat_conv(p["wl1"])), ("bl1", t(p["bl1"])),
        ("wl2", flat_conv(p["wl2"])), ("bl2", t(p["bl2"])),
        ("wl3", t(p["wl3"])),  ("bl3", t(p["bl3"])),
        ("wse1a", jnp.asarray(p["wse1"], f32)),   # (C, Cse) untransposed
        ("bse1",  jnp.asarray(p["bse1"], f32)),   # (1, Cse)
        ("wse2a", t(p["wse2"])),                  # (C, Cse)
        ("bse2",  t(p["bse2"])),                  # (C, 1)
        ("wf1", t(p["wf1"])),  ("bf1", t(p["bf1"])),
        ("wf2", t(p["wf2"])),  ("bf2", t(p["bf2"])),
        ("wd",  t(p["wd"])),
    ]
    width = max(a.shape[1] for _, a in blocks)
    width = ((width + 127) // 128) * 128
    offs, pieces, row = {}, [], 0
    for name, arr in blocks:
        r, c = arr.shape
        rpad = ((r + 7) // 8) * 8           # keep every block sublane-aligned
        offs[name] = (row, r, c)
        pieces.append(jnp.zeros((rpad, width), f32).at[:r, :c].set(arr))
        row += rpad
    return jnp.concatenate(pieces, axis=0), offs


# ---------------------------------------------------------------------------
# Wrapper
# ---------------------------------------------------------------------------

def munet_forward(hsi_nchw, lidar_nchw, p):
    N, band, H, W = hsi_nchw.shape
    L = lidar_nchw.shape[1]
    HW = H * W
    C = p["wf2"].shape[1]
    L2 = max(L // 2, 1)
    PADL = 128                              # lane halo (>= W+1), keeps interior write lane-aligned
    assert PADL >= W + 1
    HWp = HW + 2 * PADL

    # NCHW -> (C, HW) channels-first: pure reshape, no transpose needed.
    hsi = hsi_nchw.reshape(N, band, HW).astype(jnp.float32)
    lidar = lidar_nchw.reshape(N, L, HW).astype(jnp.float32)
    lpad = jnp.pad(lidar, ((0, 0), (0, 0), (PADL, PADL)))

    slab, offs = _pack_params(p)
    kernel = functools.partial(_munet_kernel, H=H, W=W, PADL=PADL, offs=offs)

    ab, rc = pl.pallas_call(
        kernel,
        out_shape=(jax.ShapeDtypeStruct((N, C, HW), jnp.float32),
                   jax.ShapeDtypeStruct((N, band, HW), jnp.float32)),
        grid=(N,),
        in_specs=[pl.BlockSpec((None, band, HW), lambda n: (n, 0, 0)),
                  pl.BlockSpec((None, L, HWp), lambda n: (n, 0, 0)),
                  pl.BlockSpec(slab.shape, lambda n: (0, 0))],
        out_specs=(pl.BlockSpec((None, C, HW), lambda n: (n, 0, 0)),
                   pl.BlockSpec((None, band, HW), lambda n: (n, 0, 0))),
        scratch_shapes=[pltpu.VMEM((L2, HWp), jnp.float32)],
        compiler_params=pltpu.CompilerParams(
            dimension_semantics=("parallel",)),
    )(hsi, lpad, slab)

    return ab.reshape(N, C, H, W), rc.reshape(N, band, H, W)


# ---------------------------------------------------------------------------
# Parameters (synthetic, deterministic); BN folded into (w, b) at prep time
# ---------------------------------------------------------------------------

def init_params(key, band, num_classes, ldr_dim):
    keys = iter(jax.random.split(key, 40))
    nk = lambda: next(keys)

    def bn_fold(c):
        kg, kb, km, kv = jax.random.split(nk(), 4)
        gamma = 1.0 + 0.1 * jax.random.normal(kg, (c,), jnp.float32)
        beta = 0.1 * jax.random.normal(kb, (c,), jnp.float32)
        mu = 0.1 * jax.random.normal(km, (c,), jnp.float32)
        var = 1.0 + 0.1 * jax.random.uniform(kv, (c,), jnp.float32)
        scale = gamma / jnp.sqrt(var + 1e-5)
        shift = beta - mu * scale
        return scale, shift

    def dense_params(cin, cout, bn=False):
        w = 0.1 * jax.random.normal(nk(), (cin, cout), jnp.float32)
        b = 0.05 * jax.random.normal(nk(), (1, cout), jnp.float32)
        if bn:
            scale, shift = bn_fold(cout)
            w = w * scale[None, :]
            b = b * scale[None, :] + shift[None, :]
        return w, b

    def conv3_params(cin, cout, bn=False):
        # (9, cin, cout); tap t corresponds to offsets (dy, dx) = (t//3 - 1, t%3 - 1)
        w = 0.1 * jax.random.normal(nk(), (9, cin, cout), jnp.float32)
        b = 0.05 * jax.random.normal(nk(), (1, cout), jnp.float32)
        if bn:
            scale, shift = bn_fold(cout)
            w = w * scale[None, None, :]
            b = b * scale[None, :] + shift[None, :]
        return w, b

    b2, b4 = max(band // 2, 1), max(band // 4, 1)
    l2, l4 = max(ldr_dim // 2, 1), max(ldr_dim // 4, 1)
    C = num_classes
    Cse = max(C // 16, 1)      # SEAttention default reduction=16
    Cf = C // 2

    p = {}
    p["wh1"], p["bh1"] = dense_params(band, b2, bn=True)
    p["wh2"], p["bh2"] = dense_params(b2, b4, bn=True)
    p["wh3"], p["bh3"] = dense_params(b4, C, bn=False)
    p["wl1"], p["bl1"] = conv3_params(ldr_dim, l2, bn=True)
    p["wl2"], p["bl2"] = conv3_params(l2, l4, bn=True)
    p["wl3"], p["bl3"] = dense_params(l4, C, bn=False)
    p["wse1"], p["bse1"] = dense_params(C, Cse, bn=False)
    p["wse2"], p["bse2"] = dense_params(Cse, C, bn=False)
    p["wf1"], p["bf1"] = dense_params(C, Cf, bn=True)
    p["wf2"], p["bf2"] = dense_params(Cf, C, bn=False)
    p["wd"] = 0.1 * jax.random.normal(nk(), (C, band), jnp.float32)  # no bias
    return p


# ---------------------------------------------------------------------------
# Pure-JAX reference (same math, no Pallas) for verification
# ---------------------------------------------------------------------------

def munet_forward_ref(hsi_nchw, lidar_nchw, p):
    N, band, H, W = hsi_nchw.shape
    HW = H * W
    C = p["wf2"].shape[1]

    def dense(x, w, b=None, act=None):
        y = jnp.dot(x, w, preferred_element_type=jnp.float32)
        if b is not None:
            y = y + b
        if act == "relu":
            y = jnp.maximum(y, 0.0)
        elif act == "sigmoid":
            y = jax.nn.sigmoid(y)
        return y

    def conv3x3(x_nhwc, w9, b):
        n, h, ww, cin = x_nhwc.shape
        xp = jnp.pad(x_nhwc, ((0, 0), (1, 1), (1, 1), (0, 0)))
        acc = jnp.zeros((n * h * ww, w9.shape[2]), jnp.float32)
        for t in range(9):
            dy, dx = t // 3, t % 3
            tap = xp[:, dy:dy + h, dx:dx + ww, :].reshape(n * h * ww, cin)
            acc = acc + jnp.dot(tap, w9[t], preferred_element_type=jnp.float32)
        return acc + b

    hsi = jnp.transpose(hsi_nchw, (0, 2, 3, 1)).reshape(N * HW, band)
    lidar = jnp.transpose(lidar_nchw, (0, 2, 3, 1))      # (N, H, W, L)

    x = dense(hsi, p["wh1"], p["bh1"], "relu")
    x = dense(x, p["wh2"], p["bh2"], "relu")
    hsi_feat = dense(x, p["wh3"], p["bh3"])              # (N*HW, C)

    y = jnp.maximum(conv3x3(lidar, p["wl1"], p["bl1"]), 0.0)
    y = jnp.maximum(conv3x3(y.reshape(N, H, W, -1), p["wl2"], p["bl2"]), 0.0)
    lidar_feat = dense(y, p["wl3"], p["bl3"])            # (N*HW, C)

    lf = lidar_feat.reshape(N, HW, C)
    se = jnp.mean(lf, axis=1)                            # (N, C)
    se = dense(se, p["wse1"], p["bse1"], "relu")
    se = dense(se, p["wse2"], p["bse2"], "sigmoid")      # (N, C)

    fused = hsi_feat.reshape(N, HW, C) * (lf * se[:, None, :])
    f = dense(fused.reshape(N * HW, C), p["wf1"], p["bf1"], "relu")
    ab = dense(f, p["wf2"], p["bf2"])                    # (N*HW, C)
    rc = jnp.maximum(jnp.dot(ab, p["wd"], preferred_element_type=jnp.float32), 0.0)

    ab = jnp.transpose(ab.reshape(N, H, W, C), (0, 3, 1, 2))
    rc = jnp.transpose(rc.reshape(N, H, W, band), (0, 3, 1, 2))
    return ab, rc


# ---------------------------------------------------------------------------

if __name__ == "__main__":
    N, band, ldr_dim, num_classes, H, W = 2, 32, 8, 16, 16, 16

    key = jax.random.PRNGKey(0)
    k_hsi, k_ldr, k_par = jax.random.split(key, 3)
    hsi = jax.random.normal(k_hsi, (N, band, H, W), jnp.float32)
    lidar = jax.random.normal(k_ldr, (N, ldr_dim, H, W), jnp.float32)
    params = init_params(k_par, band, num_classes, ldr_dim)

    fwd = jax.jit(munet_forward)
    ab, rc = fwd(hsi, lidar, params)
    jax.block_until_ready((ab, rc))

    # Pure-JAX reference check
    ab_ref, rc_ref = munet_forward_ref(hsi, lidar, params)
    assert ab.shape == (N, num_classes, H, W) and rc.shape == (N, band, H, W)
    assert jnp.allclose(ab, ab_ref, rtol=1e-3, atol=1e-3), \
        float(jnp.max(jnp.abs(ab - ab_ref)))
    assert jnp.allclose(rc, rc_ref, rtol=1e-3, atol=1e-3), \
        float(jnp.max(jnp.abs(rc - rc_ref)))

    print("KERNEL_OK")
</pallas_src>

<mosaic_0001>
module attributes {stable_mosaic.version = 11 : i64} {
  func.func @_munet_kernel(%arg0: i32, %arg1: memref<1x32x256xf32, #tpu.memory_space<vmem>>, %arg2: memref<1x8x512xf32, #tpu.memory_space<vmem>>, %arg3: memref<280x128xf32, #tpu.memory_space<vmem>>, %arg4: memref<1x16x256xf32, #tpu.memory_space<vmem>>, %arg5: memref<1x32x256xf32, #tpu.memory_space<vmem>>, %arg6: memref<4x512xf32, #tpu.memory_space<vmem>>) attributes {dimension_semantics = [#tpu.dimension_semantics<parallel>], iteration_bounds = array<i64: 2>, scalar_prefetch = 0 : i64, scratch_operands = 1 : i64, tpu.core_type = #tpu.core_type<tc>, window_params = [{transform_indices = @transform_0, window_bounds = array<i64: 1, 32, 256>}, {transform_indices = @transform_1, window_bounds = array<i64: 1, 8, 512>}, {pipeline_mode = #tpu.pipeline_mode<synchronous>, transform_indices = @transform_2, window_bounds = array<i64: 280, 128>}, {transform_indices = @transform_3, window_bounds = array<i64: 1, 16, 256>}, {transform_indices = @transform_4, window_bounds = array<i64: 1, 32, 256>}]} {
    %0 = tpu.iota {dimensions = array<i32: 1>} : vector<1x256xi32>
    %c16_i32 = arith.constant 16 : i32
    %c0_i32 = arith.constant 0 : i32
    %1 = arith.cmpi eq, %c16_i32, %c0_i32 : i32
    %c1_i32 = arith.constant 1 : i32
    %2 = arith.select %1, %c1_i32, %c16_i32 : i32
    %3 = vector.broadcast %2 : i32 to vector<1x256xi32>
    %4 = arith.remsi %0, %3 : vector<1x256xi32>
    %c0_i32_0 = arith.constant 0 : i32
    %5 = vector.broadcast %c0_i32_0 : i32 to vector<1x256xi32>
    %6 = arith.cmpi ne, %4, %5 : vector<1x256xi32>
    %c0_i32_1 = arith.constant 0 : i32
    %7 = vector.broadcast %c0_i32_1 : i32 to vector<1x256xi32>
    %8 = arith.cmpi slt, %4, %7 : vector<1x256xi32>
    %c0_i32_2 = arith.constant 0 : i32
    %9 = arith.cmpi slt, %2, %c0_i32_2 : i32
    %10 = vector.broadcast %9 : i1 to vector<1x256xi1>
    %11 = vector.broadcast %10 : vector<1x256xi1> to vector<1x256xi1>
    %12 = arith.xori %8, %11 : vector<1x256xi1>
    %13 = arith.andi %12, %6 : vector<1x256xi1>
    %14 = vector.broadcast %2 : i32 to vector<1x256xi32>
    %15 = arith.addi %4, %14 : vector<1x256xi32>
    %16 = arith.select %13, %15, %4 : vector<1x256xi1>, vector<1x256xi32>
    %c1_i32_3 = arith.constant 1 : i32
    %17 = vector.broadcast %c1_i32_3 : i32 to vector<1x256xi32>
    %18 = arith.cmpi sge, %16, %17 : vector<1x256xi32>
    %c14_i32 = arith.constant 14 : i32
    %19 = vector.broadcast %c14_i32 : i32 to vector<1x256xi32>
    %20 = arith.cmpi sle, %16, %19 : vector<1x256xi32>
    %c0 = arith.constant 0 : index
    %c0_4 = arith.constant 0 : index
    %c0_5 = arith.constant 0 : index
    %21 = vector.load %arg1[%c0, %c0_4, %c0_5] : memref<1x32x256xf32, #tpu.memory_space<vmem>>, vector<1x32x256xf32>
    %22 = vector.shape_cast %21 : vector<1x32x256xf32> to vector<32x256xf32>
    %c0_6 = arith.constant 0 : index
    %c0_7 = arith.constant 0 : index
    %23 = vector.load %arg3[%c0_6, %c0_7] : memref<280x128xf32, #tpu.memory_space<vmem>>, vector<16x32xf32>
    %cst = arith.constant dense<0.000000e+00> : vector<16x256xf32>
    %24 = tpu.matmul %23, %22, %cst {dimension_numbers = #tpu.dot_dimension_numbers<[1], [0], [0], [1], [0, 0, 1, 1], [], []>} : vector<16x32xf32>, vector<32x256xf32>, vector<16x256xf32> -> vector<16x256xf32>
    %c16 = arith.constant 16 : index
    %c0_8 = arith.constant 0 : index
    %25 = vector.load %arg3[%c16, %c0_8] : memref<280x128xf32, #tpu.memory_space<vmem>>, vector<16x1xf32>
    %26 = vector.broadcast %25 : vector<16x1xf32> to vector<16x256xf32>
    %27 = arith.addf %24, %26 : vector<16x256xf32>
    %cst_9 = arith.constant 0.000000e+00 : f32
    %28 = vector.broadcast %cst_9 : f32 to vector<16x256xf32>
    %29 = arith.maximumf %27, %28 : vector<16x256xf32>
    %c32 = arith.constant 32 : index
    %c0_10 = arith.constant 0 : index
    %30 = vector.load %arg3[%c32, %c0_10] : memref<280x128xf32, #tpu.memory_space<vmem>>, vector<8x16xf32>
    %cst_11 = arith.constant dense<0.000000e+00> : vector<8x256xf32>
    %31 = tpu.matmul %30, %29, %cst_11 {dimension_numbers = #tpu.dot_dimension_numbers<[1], [0], [0], [1], [0, 0, 1, 1], [], []>} : vector<8x16xf32>, vector<16x256xf32>, vector<8x256xf32> -> vector<8x256xf32>
    %c40 = arith.constant 40 : index
    %c0_12 = arith.constant 0 : index
    %32 = vector.load %arg3[%c40, %c0_12] : memref<280x128xf32, #tpu.memory_space<vmem>>, vector<8x1xf32>
    %33 = vector.broadcast %32 : vector<8x1xf32> to vector<8x256xf32>
    %34 = arith.addf %31, %33 : vector<8x256xf32>
    %cst_13 = arith.constant 0.000000e+00 : f32
    %35 = vector.broadcast %cst_13 : f32 to vector<8x256xf32>
    %36 = arith.maximumf %34, %35 : vector<8x256xf32>
    %c48 = arith.constant 48 : index
    %c0_14 = arith.constant 0 : index
    %37 = vector.load %arg3[%c48, %c0_14] : memref<280x128xf32, #tpu.memory_space<vmem>>, vector<16x8xf32>
    %cst_15 = arith.constant dense<0.000000e+00> : vector<16x256xf32>
    %38 = tpu.matmul %37, %36, %cst_15 {dimension_numbers = #tpu.dot_dimension_numbers<[1], [0], [0], [1], [0, 0, 1, 1], [], []>} : vector<16x8xf32>, vector<8x256xf32>, vector<16x256xf32> -> vector<16x256xf32>
    %c64 = arith.constant 64 : index
    %c0_16 = arith.constant 0 : index
    %39 = vector.load %arg3[%c64, %c0_16] : memref<280x128xf32, #tpu.memory_space<vmem>>, vector<16x1xf32>
    %40 = vector.broadcast %39 : vector<16x1xf32> to vector<16x256xf32>
    %41 = arith.addf %38, %40 : vector<16x256xf32>
    %c0_17 = arith.constant 0 : index
    %c0_18 = arith.constant 0 : index
    %c111 = arith.constant 111 : index
    %42 = vector.load %arg2[%c0_17, %c0_18, %c111] : memref<1x8x512xf32, #tpu.memory_space<vmem>>, vector<1x8x256xf32>
    %43 = vector.shape_cast %42 : vector<1x8x256xf32> to vector<8x256xf32>
    %cst_19 = arith.constant 0.000000e+00 : f32
    %44 = vector.shape_cast %18 : vector<1x256xi1> to vector<1x256xi1>
    %45 = vector.broadcast %44 : vector<1x256xi1> to vector<8x256xi1>
    %46 = vector.broadcast %cst_19 : f32 to vector<8x256xf32>
    %47 = arith.select %45, %43, %46 : vector<8x256xi1>, vector<8x256xf32>
    %c0_20 = arith.constant 0 : index
    %c0_21 = arith.constant 0 : index
    %c112 = arith.constant 112 : index
    %48 = vector.load %arg2[%c0_20, %c0_21, %c112] : memref<1x8x512xf32, #tpu.memory_space<vmem>>, vector<1x8x256xf32>
    %49 = vector.shape_cast %48 : vector<1x8x256xf32> to vector<8x256xf32>
    %c0_22 = arith.constant 0 : index
    %c0_23 = arith.constant 0 : index
    %c113 = arith.constant 113 : index
    %50 = vector.load %arg2[%c0_22, %c0_23, %c113] : memref<1x8x512xf32, #tpu.memory_space<vmem>>, vector<1x8x256xf32>
    %51 = vector.shape_cast %50 : vector<1x8x256xf32> to vector<8x256xf32>
    %cst_24 = arith.constant 0.000000e+00 : f32
    %52 = vector.shape_cast %20 : vector<1x256xi1> to vector<1x256xi1>
    %53 = vector.broadcast %52 : vector<1x256xi1> to vector<8x256xi1>
    %54 = vector.broadcast %cst_24 : f32 to vector<8x256xf32>
    %55 = arith.select %53, %51, %54 : vector<8x256xi1>, vector<8x256xf32>
    %c0_25 = arith.constant 0 : index
    %c0_26 = arith.constant 0 : index
    %c127 = arith.constant 127 : index
    %56 = vector.load %arg2[%c0_25, %c0_26, %c127] : memref<1x8x512xf32, #tpu.memory_space<vmem>>, vector<1x8x256xf32>
    %57 = vector.shape_cast %56 : vector<1x8x256xf32> to vector<8x256xf32>
    %cst_27 = arith.constant 0.000000e+00 : f32
    %58 = vector.shape_cast %18 : vector<1x256xi1> to vector<1x256xi1>
    %59 = vector.broadcast %58 : vector<1x256xi1> to vector<8x256xi1>
    %60 = vector.broadcast %cst_27 : f32 to vector<8x256xf32>
    %61 = arith.select %59, %57, %60 : vector<8x256xi1>, vector<8x256xf32>
    %c0_28 = arith.constant 0 : index
    %c0_29 = arith.constant 0 : index
    %c128 = arith.constant 128 : index
    %62 = vector.load %arg2[%c0_28, %c0_29, %c128] : memref<1x8x512xf32, #tpu.memory_space<vmem>>, vector<1x8x256xf32>
    %63 = vector.shape_cast %62 : vector<1x8x256xf32> to vector<8x256xf32>
    %c0_30 = arith.constant 0 : index
    %c0_31 = arith.constant 0 : index
    %c129 = arith.constant 129 : index
    %64 = vector.load %arg2[%c0_30, %c0_31, %c129] : memref<1x8x512xf32, #tpu.memory_space<vmem>>, vector<1x8x256xf32>
    %65 = vector.shape_cast %64 : vector<1x8x256xf32> to vector<8x256xf32>
    %cst_32 = arith.constant 0.000000e+00 : f32
    %66 = vector.shape_cast %20 : vector<1x256xi1> to vector<1x256xi1>
    %67 = vector.broadcast %66 : vector<1x256xi1> to vector<8x256xi1>
    %68 = vector.broadcast %cst_32 : f32 to vector<8x256xf32>
    %69 = arith.select %67, %65, %68 : vector<8x256xi1>, vector<8x256xf32>
    %c0_33 = arith.constant 0 : index
    %c0_34 = arith.constant 0 : index
    %c143 = arith.constant 143 : index
    %70 = vector.load %arg2[%c0_33, %c0_34, %c143] : memref<1x8x512xf32, #tpu.memory_space<vmem>>, vector<1x8x256xf32>
    %71 = vector.shape_cast %70 : vector<1x8x256xf32> to vector<8x256xf32>
    %cst_35 = arith.constant 0.000000e+00 : f32
    %72 = vector.shape_cast %18 : vector<1x256xi1> to vector<1x256xi1>
    %73 = vector.broadcast %72 : vector<1x256xi1> to vector<8x256xi1>
    %74 = vector.broadcast %cst_35 : f32 to vector<8x256xf32>
    %75 = arith.select %73, %71, %74 : vector<8x256xi1>, vector<8x256xf32>
    %c0_36 = arith.constant 0 : index
    %c0_37 = arith.constant 0 : index
    %c144 = arith.constant 144 : index
    %76 = vector.load %arg2[%c0_36, %c0_37, %c144] : memref<1x8x512xf32, #tpu.memory_space<vmem>>, vector<1x8x256xf32>
    %77 = vector.shape_cast %76 : vector<1x8x256xf32> to vector<8x256xf32>
    %c0_38 = arith.constant 0 : index
    %c0_39 = arith.constant 0 : index
    %c145 = arith.constant 145 : index
    %78 = vector.load %arg2[%c0_38, %c0_39, %c145] : memref<1x8x512xf32, #tpu.memory_space<vmem>>, vector<1x8x256xf32>
    %79 = vector.shape_cast %78 : vector<1x8x256xf32> to vector<8x256xf32>
    %cst_40 = arith.constant 0.000000e+00 : f32
    %80 = vector.shape_cast %20 : vector<1x256xi1> to vector<1x256xi1>
    %81 = vector.broadcast %80 : vector<1x256xi1> to vector<8x256xi1>
    %82 = vector.broadcast %cst_40 : f32 to vector<8x256xf32>
    %83 = arith.select %81, %79, %82 : vector<8x256xi1>, vector<8x256xf32>
    %84 = tpu.concatenate %47, %49, %55, %61, %63, %69, %75, %77, %83 in 0 : vector<8x256xf32>, vector<8x256xf32>, vector<8x256xf32>, vector<8x256xf32>, vector<8x256xf32>, vector<8x256xf32>, vector<8x256xf32>, vector<8x256xf32>, vector<8x256xf32> -> vector<72x256xf32>
    %c80 = arith.constant 80 : index
    %c0_41 = arith.constant 0 : index
    %85 = vector.load %arg3[%c80, %c0_41] : memref<280x128xf32, #tpu.memory_space<vmem>>, vector<4x72xf32>
    %cst_42 = arith.constant dense<0.000000e+00> : vector<4x256xf32>
    %86 = tpu.matmul %85, %84, %cst_42 {dimension_numbers = #tpu.dot_dimension_numbers<[1], [0], [0], [1], [0, 0, 1, 1], [], []>} : vector<4x72xf32>, vector<72x256xf32>, vector<4x256xf32> -> vector<4x256xf32>
    %c88 = arith.constant 88 : index
    %c0_43 = arith.constant 0 : index
    %87 = vector.load %arg3[%c88, %c0_43] : memref<280x128xf32, #tpu.memory_space<vmem>>, vector<4x1xf32>
    %88 = vector.broadcast %87 : vector<4x1xf32> to vector<4x256xf32>
    %89 = arith.addf %86, %88 : vector<4x256xf32>
    %cst_44 = arith.constant 0.000000e+00 : f32
    %90 = vector.broadcast %cst_44 : f32 to vector<4x256xf32>
    %91 = arith.maximumf %89, %90 : vector<4x256xf32>
    %cst_45 = arith.constant 0.000000e+00 : f32
    %92 = vector.broadcast %cst_45 : f32 to vector<4x128xf32>
    %c0_46 = arith.constant 0 : index
    %c0_47 = arith.constant 0 : index
    %93 = vector.load %arg6[%c0_46, %c0_47] : memref<4x512xf32, #tpu.memory_space<vmem>>, vector<4x128xf32>
    tpu.vector_store %arg6[%c0_46, %c0_47], %92 {strides = array<i32>} : memref<4x512xf32, #tpu.memory_space<vmem>>, vector<4x128xf32>,
    %c0_48 = arith.constant 0 : index
    %c384 = arith.constant 384 : index
    %94 = vector.load %arg6[%c0_48, %c384] : memref<4x512xf32, #tpu.memory_space<vmem>>, vector<4x128xf32>
    tpu.vector_store %arg6[%c0_48, %c384], %92 {strides = array<i32>} : memref<4x512xf32, #tpu.memory_space<vmem>>, vector<4x128xf32>,
    %c0_49 = arith.constant 0 : index
    %c128_50 = arith.constant 128 : index
    %95 = vector.load %arg6[%c0_49, %c128_50] : memref<4x512xf32, #tpu.memory_space<vmem>>, vector<4x256xf32>
    tpu.vector_store %arg6[%c0_49, %c128_50], %91 {strides = array<i32>} : memref<4x512xf32, #tpu.memory_space<vmem>>, vector<4x256xf32>,
    %c0_51 = arith.constant 0 : index
    %c111_52 = arith.constant 111 : index
    %96 = vector.load %arg6[%c0_51, %c111_52] : memref<4x512xf32, #tpu.memory_space<vmem>>, vector<4x256xf32>
    %cst_53 = arith.constant 0.000000e+00 : f32
    %97 = vector.shape_cast %18 : vector<1x256xi1> to vector<1x256xi1>
    %98 = vector.broadcast %97 : vector<1x256xi1> to vector<4x256xi1>
    %99 = vector.broadcast %cst_53 : f32 to vector<4x256xf32>
    %100 = arith.select %98, %96, %99 : vector<4x256xi1>, vector<4x256xf32>
    %c0_54 = arith.constant 0 : index
    %c112_55 = arith.constant 112 : index
    %101 = vector.load %arg6[%c0_54, %c112_55] : memref<4x512xf32, #tpu.memory_space<vmem>>, vector<4x256xf32>
    %c0_56 = arith.constant 0 : index
    %c113_57 = arith.constant 113 : index
    %102 = vector.load %arg6[%c0_56, %c113_57] : memref<4x512xf32, #tpu.memory_space<vmem>>, vector<4x256xf32>
    %cst_58 = arith.constant 0.000000e+00 : f32
    %103 = vector.shape_cast %20 : vector<1x256xi1> to vector<1x256xi1>
    %104 = vector.broadcast %103 : vector<1x256xi1> to vector<4x256xi1>
    %105 = vector.broadcast %cst_58 : f32 to vector<4x256xf32>
    %106 = arith.select %104, %102, %105 : vector<4x256xi1>, vector<4x256xf32>
    %c0_59 = arith.constant 0 : index
    %c127_60 = arith.constant 127 : index
    %107 = vector.load %arg6[%c0_59, %c127_60] : memref<4x512xf32, #tpu.memory_space<vmem>>, vector<4x256xf32>
    %cst_61 = arith.constant 0.000000e+00 : f32
    %108 = vector.shape_cast %18 : vector<1x256xi1> to vector<1x256xi1>
    %109 = vector.broadcast %108 : vector<1x256xi1> to vector<4x256xi1>
    %110 = vector.broadcast %cst_61 : f32 to vector<4x256xf32>
    %111 = arith.select %109, %107, %110 : vector<4x256xi1>, vector<4x256xf32>
    %c0_62 = arith.constant 0 : index
    %c128_63 = arith.constant 128 : index
    %112 = vector.load %arg6[%c0_62, %c128_63] : memref<4x512xf32, #tpu.memory_space<vmem>>, vector<4x256xf32>
    %c0_64 = arith.constant 0 : index
    %c129_65 = arith.constant 129 : index
    %113 = vector.load %arg6[%c0_64, %c129_65] : memref<4x512xf32, #tpu.memory_space<vmem>>, vector<4x256xf32>
    %cst_66 = arith.constant 0.000000e+00 : f32
    %114 = vector.shape_cast %20 : vector<1x256xi1> to vector<1x256xi1>
    %115 = vector.broadcast %114 : vector<1x256xi1> to vector<4x256xi1>
    %116 = vector.broadcast %cst_66 : f32 to vector<4x256xf32>
    %117 = arith.select %115, %113, %116 : vector<4x256xi1>, vector<4x256xf32>
    %c0_67 = arith.constant 0 : index
    %c143_68 = arith.constant 143 : index
    %118 = vector.load %arg6[%c0_67, %c143_68] : memref<4x512xf32, #tpu.memory_space<vmem>>, vector<4x256xf32>
    %cst_69 = arith.constant 0.000000e+00 : f32
    %119 = vector.shape_cast %18 : vector<1x256xi1> to vector<1x256xi1>
    %120 = vector.broadcast %119 : vector<1x256xi1> to vector<4x256xi1>
    %121 = vector.broadcast %cst_69 : f32 to vector<4x256xf32>
    %122 = arith.select %120, %118, %121 : vector<4x256xi1>, vector<4x256xf32>
    %c0_70 = arith.constant 0 : index
    %c144_71 = arith.constant 144 : index
    %123 = vector.load %arg6[%c0_70, %c144_71] : memref<4x512xf32, #tpu.memory_space<vmem>>, vector<4x256xf32>
    %c0_72 = arith.constant 0 : index
    %c145_73 = arith.constant 145 : index
    %124 = vector.load %arg6[%c0_72, %c145_73] : memref<4x512xf32, #tpu.memory_space<vmem>>, vector<4x256xf32>
    %cst_74 = arith.constant 0.000000e+00 : f32
    %125 = vector.shape_cast %20 : vector<1x256xi1> to vector<1x256xi1>
    %126 = vector.broadcast %125 : vector<1x256xi1> to vector<4x256xi1>
    %127 = vector.broadcast %cst_74 : f32 to vector<4x256xf32>
    %128 = arith.select %126, %124, %127 : vector<4x256xi1>, vector<4x256xf32>
    %129 = tpu.concatenate %100, %101, %106, %111, %112, %117, %122, %123, %128 in 0 : vector<4x256xf32>, vector<4x256xf32>, vector<4x256xf32>, vector<4x256xf32>, vector<4x256xf32>, vector<4x256xf32>, vector<4x256xf32>, vector<4x256xf32>, vector<4x256xf32> -> vector<36x256xf32>
    %c96 = arith.constant 96 : index
    %c0_75 = arith.constant 0 : index
    %130 = vector.load %arg3[%c96, %c0_75] : memref<280x128xf32, #tpu.memory_space<vmem>>, vector<2x36xf32>
    %cst_76 = arith.constant dense<0.000000e+00> : vector<2x256xf32>
    %131 = tpu.matmul %130, %129, %cst_76 {dimension_numbers = #tpu.dot_dimension_numbers<[1], [0], [0], [1], [0, 0, 1, 1], [], []>} : vector<2x36xf32>, vector<36x256xf32>, vector<2x256xf32> -> vector<2x256xf32>
    %c104 = arith.constant 104 : index
    %c0_77 = arith.constant 0 : index
    %132 = vector.load %arg3[%c104, %c0_77] : memref<280x128xf32, #tpu.memory_space<vmem>>, vector<2x1xf32>
    %133 = vector.broadcast %132 : vector<2x1xf32> to vector<2x256xf32>
    %134 = arith.addf %131, %133 : vector<2x256xf32>
    %cst_78 = arith.constant 0.000000e+00 : f32
    %135 = vector.broadcast %cst_78 : f32 to vector<2x256xf32>
    %136 = arith.maximumf %134, %135 : vector<2x256xf32>
    %c112_79 = arith.constant 112 : index
    %c0_80 = arith.constant 0 : index
    %137 = vector.load %arg3[%c112_79, %c0_80] : memref<280x128xf32, #tpu.memory_space<vmem>>, vector<16x2xf32>
    %cst_81 = arith.constant dense<0.000000e+00> : vector<16x256xf32>
    %138 = tpu.matmul %137, %136, %cst_81 {dimension_numbers = #tpu.dot_dimension_numbers<[1], [0], [0], [1], [0, 0, 1, 1], [], []>} : vector<16x2xf32>, vector<2x256xf32>, vector<16x256xf32> -> vector<16x256xf32>
    %c128_82 = arith.constant 128 : index
    %c0_83 = arith.constant 0 : index
    %139 = vector.load %arg3[%c128_82, %c0_83] : memref<280x128xf32, #tpu.memory_space<vmem>>, vector<16x1xf32>
    %140 = vector.broadcast %139 : vector<16x1xf32> to vector<16x256xf32>
    %141 = arith.addf %138, %140 : vector<16x256xf32>
    %cst_84 = arith.constant dense<0.000000e+00> : vector<16xf32>
    %142 = vector.multi_reduction <add>, %141, %cst_84 [1] : vector<16x256xf32> to vector<16xf32>
    %143 = vector.shape_cast %142 : vector<16xf32> to vector<16x1xf32>
    %cst_85 = arith.constant 2.560000e+02 : f32
    %144 = vector.broadcast %cst_85 : f32 to vector<16x1xf32>
    %145 = arith.divf %143, %144 : vector<16x1xf32>
    %c144_86 = arith.constant 144 : index
    %c0_87 = arith.constant 0 : index
    %146 = vector.load %arg3[%c144_86, %c0_87] : memref<280x128xf32, #tpu.memory_space<vmem>>, vector<16x1xf32>
    %147 = arith.mulf %145, %146 : vector<16x1xf32>
    %cst_88 = arith.constant dense<0.000000e+00> : vector<1xf32>
    %148 = vector.multi_reduction <add>, %147, %cst_88 [0] : vector<16x1xf32> to vector<1xf32>
    %149 = vector.shape_cast %148 : vector<1xf32> to vector<1x1xf32>
    %c160 = arith.constant 160 : index
    %c0_89 = arith.constant 0 : index
    %150 = vector.load %arg3[%c160, %c0_89] : memref<280x128xf32, #tpu.memory_space<vmem>>, vector<1x1xf32>
    %151 = arith.addf %149, %150 : vector<1x1xf32>
    %cst_90 = arith.constant 0.000000e+00 : f32
    %152 = vector.broadcast %cst_90 : f32 to vector<1x1xf32>
    %153 = arith.maximumf %151, %152 : vector<1x1xf32>
    %c168 = arith.constant 168 : index
    %c0_91 = arith.constant 0 : index
    %154 = vector.load %arg3[%c168, %c0_91] : memref<280x128xf32, #tpu.memory_space<vmem>>, vector<16x1xf32>
    %155 = vector.broadcast %153 : vector<1x1xf32> to vector<16x1xf32>
    %156 = arith.mulf %154, %155 : vector<16x1xf32>
    %cst_92 = arith.constant dense<0.000000e+00> : vector<16xf32>
    %157 = vector.multi_reduction <add>, %156, %cst_92 [1] : vector<16x1xf32> to vector<16xf32>
    %158 = vector.shape_cast %157 : vector<16xf32> to vector<16x1xf32>
    %c184 = arith.constant 184 : index
    %c0_93 = arith.constant 0 : index
    %159 = vector.load %arg3[%c184, %c0_93] : memref<280x128xf32, #tpu.memory_space<vmem>>, vector<16x1xf32>
    %160 = arith.addf %158, %159 : vector<16x1xf32>
    %161 = arith.negf %160 : vector<16x1xf32>
    %162 = math.exp %161 : vector<16x1xf32>
    %cst_94 = arith.constant 1.000000e+00 : f32
    %163 = vector.broadcast %cst_94 : f32 to vector<16x1xf32>
    %164 = arith.addf %163, %162 : vector<16x1xf32>
    %165 = arith.divf %163, %164 : vector<16x1xf32>
    %166 = vector.broadcast %165 : vector<16x1xf32> to vector<16x256xf32>
    %167 = arith.mulf %141, %166 : vector<16x256xf32>
    %168 = arith.mulf %41, %167 : vector<16x256xf32>
    %c200 = arith.constant 200 : index
    %c0_95 = arith.constant 0 : index
    %169 = vector.load %arg3[%c200, %c0_95] : memref<280x128xf32, #tpu.memory_space<vmem>>, vector<8x16xf32>
    %cst_96 = arith.constant dense<0.000000e+00> : vector<8x256xf32>
    %170 = tpu.matmul %169, %168, %cst_96 {dimension_numbers = #tpu.dot_dimension_numbers<[1], [0], [0], [1], [0, 0, 1, 1], [], []>} : vector<8x16xf32>, vector<16x256xf32>, vector<8x256xf32> -> vector<8x256xf32>
    %c208 = arith.constant 208 : index
    %c0_97 = arith.constant 0 : index
    %171 = vector.load %arg3[%c208, %c0_97] : memref<280x128xf32, #tpu.memory_space<vmem>>, vector<8x1xf32>
    %172 = vector.broadcast %171 : vector<8x1xf32> to vector<8x256xf32>
    %173 = arith.addf %170, %172 : vector<8x256xf32>
    %cst_98 = arith.constant 0.000000e+00 : f32
    %174 = vector.broadcast %cst_98 : f32 to vector<8x256xf32>
    %175 = arith.maximumf %173, %174 : vector<8x256xf32>
    %c216 = arith.constant 216 : index
    %c0_99 = arith.constant 0 : index
    %176 = vector.load %arg3[%c216, %c0_99] : memref<280x128xf32, #tpu.memory_space<vmem>>, vector<16x8xf32>
    %cst_100 = arith.constant dense<0.000000e+00> : vector<16x256xf32>
    %177 = tpu.matmul %176, %175, %cst_100 {dimension_numbers = #tpu.dot_dimension_numbers<[1], [0], [0], [1], [0, 0, 1, 1], [], []>} : vector<16x8xf32>, vector<8x256xf32>, vector<16x256xf32> -> vector<16x256xf32>
    %c232 = arith.constant 232 : index
    %c0_101 = arith.constant 0 : index
    %178 = vector.load %arg3[%c232, %c0_101] : memref<280x128xf32, #tpu.memory_space<vmem>>, vector<16x1xf32>
    %179 = vector.broadcast %178 : vector<16x1xf32> to vector<16x256xf32>
    %180 = arith.addf %177, %179 : vector<16x256xf32>
    %c248 = arith.constant 248 : index
    %c0_102 = arith.constant 0 : index
    %181 = vector.load %arg3[%c248, %c0_102] : memref<280x128xf32, #tpu.memory_space<vmem>>, vector<32x16xf32>
    %cst_103 = arith.constant dense<0.000000e+00> : vector<32x256xf32>
    %182 = tpu.matmul %181, %180, %cst_103 {dimension_numbers = #tpu.dot_dimension_numbers<[1], [0], [0], [1], [0, 0, 1, 1], [], []>} : vector<32x16xf32>, vector<16x256xf32>, vector<32x256xf32> -> vector<32x256xf32>
    %cst_104 = arith.constant 0.000000e+00 : f32
    %183 = vector.broadcast %cst_104 : f32 to vector<32x256xf32>
    %184 = arith.maximumf %182, %183 : vector<32x256xf32>
    %c0_105 = arith.constant 0 : index
    %c0_106 = arith.constant 0 : index
    %c0_107 = arith.constant 0 : index
    %185 = vector.load %arg4[%c0_105, %c0_106, %c0_107] : memref<1x16x256xf32, #tpu.memory_space<vmem>>, vector<1x16x256xf32>
    %186 = vector.shape_cast %185 : vector<1x16x256xf32> to vector<16x256xf32>
    %187 = vector.shape_cast %180 : vector<16x256xf32> to vector<1x16x256xf32>
    tpu.vector_store %arg4[%c0_105, %c0_106, %c0_107], %187 {strides = array<i32>} : memref<1x16x256xf32, #tpu.memory_space<vmem>>, vector<1x16x256xf32>,
    %c0_108 = arith.constant 0 : index
    %c0_109 = arith.constant 0 : index
    %c0_110 = arith.constant 0 : index
    %188 = vector.load %arg5[%c0_108, %c0_109, %c0_110] : memref<1x32x256xf32, #tpu.memory_space<vmem>>, vector<1x32x256xf32>
    %189 = vector.shape_cast %188 : vector<1x32x256xf32> to vector<32x256xf32>
    %190 = vector.shape_cast %184 : vector<32x256xf32> to vector<1x32x256xf32>
    tpu.vector_store %arg5[%c0_108, %c0_109, %c0_110], %190 {strides = array<i32>} : memref<1x32x256xf32, #tpu.memory_space<vmem>>, vector<1x32x256xf32>,
    return
  }
  func.func @transform_0(%arg0: i32) -> (i32, i32, i32) {
    %c0_i32 = arith.constant 0 : i32
    %c0_i32_0 = arith.constant 0 : i32
    %c0_i32_1 = arith.constant 0 : i32
    return %arg0, %c0_i32, %c0_i32_0 : i32, i32, i32
  }
  func.func @transform_1(%arg0: i32) -> (i32, i32, i32) {
    %c0_i32 = arith.constant 0 : i32
    %c0_i32_0 = arith.constant 0 : i32
    %c0_i32_1 = arith.constant 0 : i32
    return %arg0, %c0_i32, %c0_i32_0 : i32, i32, i32
  }
  func.func @transform_2(%arg0: i32) -> (i32, i32) {
    %c0_i32 = arith.constant 0 : i32
    %c0_i32_0 = arith.constant 0 : i32
    %c0_i32_1 = arith.constant 0 : i32
    return %c0_i32, %c0_i32_0 : i32, i32
  }
  func.func @transform_3(%arg0: i32) -> (i32, i32, i32) {
    %c0_i32 = arith.constant 0 : i32
    %c0_i32_0 = arith.constant 0 : i32
    %c0_i32_1 = arith.constant 0 : i32
    return %arg0, %c0_i32, %c0_i32_0 : i32, i32, i32
  }
  func.func @transform_4(%arg0: i32) -> (i32, i32, i32) {
    %c0_i32 = arith.constant 0 : i32
    %c0_i32_0 = arith.constant 0 : i32
    %c0_i32_1 = arith.constant 0 : i32
    return %arg0, %c0_i32, %c0_i32_0 : i32, i32, i32
  }
}

</mosaic_0001>

<llo_original>
// kernel: munet_forward.1
$region0: #{munet_forward.1}
  #allocation0 [shape = 'u32[]', space=smem, size = 0x4, offset = 0x4, fixed_abs, tag = 'smem constant byte address 0x4 - core index']
  #allocation1 [shape = 'u32[144,128]{1,0:T(1,128)}', space=vmem, size = 0x12000, scoped, tag = 'internal scratch']
  #allocation2 [shape = 'f32[4,512]{1,0:T(4,128)}', space=vmem, size = 0x2000, scoped, tag = 'scratch operand']
  %s0 = inlined_call_operand.vmem [shape: f32[2,32,256], index: 0, kind: input, shape index: {}]
  %s1 = inlined_call_operand.vmem [shape: f32[2,8,512], index: 1, kind: input, shape index: {}]
  %s2 = inlined_call_operand.vmem [shape: f32[280,128], index: 2, kind: input, shape index: {}]
  %s3 = inlined_call_operand.vmem [shape: f32[2,16,256], index: 3, kind: output, shape index: {0}]
  %s4 = inlined_call_operand.vmem [shape: f32[2,32,256], index: 4, kind: output, shape index: {1}]
  %5 = xla_tuple %s3, %s4
  %s6 = sld [smem:[#allocation0]]
  $region53: #{munet_forward.1} parent=0
    _
  %s8 = ssub.s32 1, %s6
  %s9 = scalar_select 0, %s8, %s6
  loop: start=0, step=1, limit=4
  $region2: #{munet_forward.1} parent=0 // loop_pre_header
    _
  $region3: #{munet_forward.1} parent=0 // loop_header
    %s11 = sphi 0, %s15
    %p12 = scmp.ge.s32.totalorder %s11, 4
    %s21 = sphi 0, %s23
    %s24 = sphi 0, %s21
    %s25 = sphi 0, %s24
    %s41 = sphi 0, %s25
    %s47 = sphi 0, %s49
    %s50 = sphi 0, %s47
    %s51 = sphi 0, %s50
    %s67 = sphi 0, %s51
    %s71 = sphi 0, %s71
    %s73 = sphi 0, %s71
    %s74 = sphi 0, %s73
    %s88 = sphi 0, %s74
    %s94 = sphi 0, %s96
    %s97 = sphi 0, %s94
    %s98 = sphi 0, %s97
    %s114 = sphi 0, %s98
    %s120 = sphi 0, %s122
    %s123 = sphi 0, %s120
    %s124 = sphi 0, %s123
    %s140 = sphi 0, %s124
  $region4: #{munet_forward.1} parent=0 // loop_header_branch
    %14 = sbr.rel (%p12) target = $region8
  $region5: #{munet_forward.1} parent=0 // loop_body
    %s16 = ssub.s32 %s11, 1
    %s17 = ssub.s32 %s11, 2
    %s18 = sadd.s32 %s11, 1
    %s19 = ssub.s32 %s11, %s18
    %p20 = scmp.eq.s32.totalorder %s19, 0
    %s22 = sadd.s32 %s21, 1
    %s23 = scalar_select %p20, %s21, %s22
    %p26 = pneg %p20
    %p27 = scmp.eq.s32.totalorder %s11, 1
    %p28 = por %p26, %p27
    %p29 = scmp.ne.s32.totalorder %s21, %s24
    %p30 = scmp.eq.s32.totalorder %s11, 0
    %p31 = por %p29, %p30
    %p32 = scmp.ne.s32.totalorder %s21, %s24
    %p33 = scmp.eq.s32.totalorder %s16, 1
    %p34 = por %p32, %p33
    %p35 = scmp.ne.s32.totalorder %s24, %s25
    %p36 = scmp.eq.s32.totalorder %s16, 0
    %p37 = por %p35, %p36
    %p38 = scmp.ne.s32.totalorder %s24, %s25
    %p39 = scmp.eq.s32.totalorder %s17, 1
    %p40 = por %p38, %p39
    %p42 = scmp.ne.s32.totalorder %s25, %s41
    %p43 = scmp.eq.s32.totalorder %s17, 0
    %p44 = por %p42, %p43
    %s45 = ssub.s32 %s11, %s18
    %p46 = scmp.eq.s32.totalorder %s45, 0
    %s48 = sadd.s32 %s47, 1
    %s49 = scalar_select %p46, %s47, %s48
    %p52 = pneg %p46
    %p53 = scmp.eq.s32.totalorder %s11, 1
    %p54 = por %p52, %p53
    %p55 = scmp.ne.s32.totalorder %s47, %s50
    %p56 = scmp.eq.s32.totalorder %s11, 0
    %p57 = por %p55, %p56
    %p58 = scmp.ne.s32.totalorder %s47, %s50
    %p59 = scmp.eq.s32.totalorder %s16, 1
    %p60 = por %p58, %p59
    %p61 = scmp.ne.s32.totalorder %s50, %s51
    %p62 = scmp.eq.s32.totalorder %s16, 0
    %p63 = por %p61, %p62
    %p64 = scmp.ne.s32.totalorder %s50, %s51
    %p65 = scmp.eq.s32.totalorder %s17, 1
    %p66 = por %p64, %p65
    %p68 = scmp.ne.s32.totalorder %s51, %s67
    %p69 = scmp.eq.s32.totalorder %s17, 0
    %p70 = por %p68, %p69
    %s72 = sadd.s32 %s71, 1
    %p75 = scmp.eq.s32.totalorder %s11, 1
    %p76 = scmp.ne.s32.totalorder %s71, %s73
    %p77 = scmp.eq.s32.totalorder %s11, 0
    %p78 = por %p76, %p77
    %p79 = scmp.ne.s32.totalorder %s71, %s73
    %p80 = scmp.eq.s32.totalorder %s16, 1
    %p81 = por %p79, %p80
    %p82 = scmp.ne.s32.totalorder %s73, %s74
    %p83 = scmp.eq.s32.totalorder %s16, 0
    %p84 = por %p82, %p83
    %p85 = scmp.ne.s32.totalorder %s73, %s74
    %p86 = scmp.eq.s32.totalorder %s17, 1
    %p87 = por %p85, %p86
    %p89 = scmp.ne.s32.totalorder %s74, %s88
    %p90 = scmp.eq.s32.totalorder %s17, 0
    %p91 = por %p89, %p90
    %s92 = ssub.s32 %s11, %s18
    %p93 = scmp.eq.s32.totalorder %s92, 0
    %s95 = sadd.s32 %s94, 1
    %s96 = scalar_select %p93, %s94, %s95
    %p99 = pneg %p93
    %p100 = scmp.eq.s32.totalorder %s11, 1
    %p101 = por %p99, %p100
    %p102 = scmp.ne.s32.totalorder %s94, %s97
    %p103 = scmp.eq.s32.totalorder %s11, 0
    %p104 = por %p102, %p103
    %p105 = scmp.ne.s32.totalorder %s94, %s97
    %p106 = scmp.eq.s32.totalorder %s16, 1
    %p107 = por %p105, %p106
    %p108 = scmp.ne.s32.totalorder %s97, %s98
    %p109 = scmp.eq.s32.totalorder %s16, 0
    %p110 = por %p108, %p109
    %p111 = scmp.ne.s32.totalorder %s97, %s98
    %p112 = scmp.eq.s32.totalorder %s17, 1
    %p113 = por %p111, %p112
    %p115 = scmp.ne.s32.totalorder %s98, %s114
    %p116 = scmp.eq.s32.totalorder %s17, 0
    %p117 = por %p115, %p116
    %s118 = ssub.s32 %s11, %s18
    %p119 = scmp.eq.s32.totalorder %s118, 0
    %s121 = sadd.s32 %s120, 1
    %s122 = scalar_select %p119, %s120, %s121
    %p125 = pneg %p119
    %p126 = scmp.eq.s32.totalorder %s11, 1
    %p127 = por %p125, %p126
    %p128 = scmp.ne.s32.totalorder %s120, %s123
    %p129 = scmp.eq.s32.totalorder %s11, 0
    %p130 = por %p128, %p129
    %p131 = scmp.ne.s32.totalorder %s120, %s123
    %p132 = scmp.eq.s32.totalorder %s16, 1
    %p133 = por %p131, %p132
    %p134 = scmp.ne.s32.totalorder %s123, %s124
    %p135 = scmp.eq.s32.totalorder %s16, 0
    %p136 = por %p134, %p135
    %p137 = scmp.ne.s32.totalorder %s123, %s124
    %p138 = scmp.eq.s32.totalorder %s17, 1
    %p139 = por %p137, %p138
    %p141 = scmp.ne.s32.totalorder %s124, %s140
    %p142 = scmp.eq.s32.totalorder %s17, 0
    %p143 = por %p141, %p142
    %p144 = scmp.le.s32.totalorder 1, %s11
    %p145 = scmp.lt.s32.totalorder %s11, 3
    %p146 = pnand %p144, %p145
    %p147 = pneg %p146
    // Predicated region
    $region9: #{munet_forward.1} parent=5 // pred_check
      _
    $region10: #{munet_forward.1} parent=5 // pred_check_branch
      %149 = sbr.rel (%p146) target = $region12
    $region11: #{munet_forward.1} parent=5 // pred_region
      %s150 = ssub.s32 %s11, 1
      // Predicated region
      $region13: #{munet_forward.1} parent=11 // pred_check
        %p151 = pneg %p84
      $region14: #{munet_forward.1} parent=11 // pred_check_branch
        %153 = sbr.rel (%p151) target = $region16
      $region15: #{munet_forward.1} parent=11 // pred_region
        _
      $region16: #{munet_forward.1} parent=11 // pred_fallthru
        _
    $region12: #{munet_forward.1} parent=5 // pred_fallthru
      _
    %p154 = scmp.lt.s32.totalorder %s11, 2
    // Predicated region
    $region17: #{munet_forward.1} parent=5 // pred_check
      %p155 = pneg %p154
    $region18: #{munet_forward.1} parent=5 // pred_check_branch
      %157 = sbr.rel (%p155) target = $region20
    $region19: #{munet_forward.1} parent=5 // pred_region
      // Predicated region
      $region21: #{munet_forward.1} parent=19 // pred_check
        %p158 = pneg %p31
      $region22: #{munet_forward.1} parent=19 // pred_check_branch
        %160 = sbr.rel (%p158) target = $region24
      $region23: #{munet_forward.1} parent=19 // pred_region
        %p161 = scmp.lt.s32.totalorder %s11, 1
        %s162 = scalar_select %p161, %s11, 1
        %s163 = smul.addr %s162, 8
        %s164 = smul.addr %s163, 8
        %s165 = scalar_lea.vmem %s0, %s164
      $region24: #{munet_forward.1} parent=19 // pred_fallthru
        _
      // Predicated region
      $region25: #{munet_forward.1} parent=19 // pred_check
        %p166 = pneg %p57
      $region26: #{munet_forward.1} parent=19 // pred_check_branch
        %168 = sbr.rel (%p166) target = $region28
      $region27: #{munet_forward.1} parent=19 // pred_region
        %p169 = scmp.lt.s32.totalorder %s11, 1
        %s170 = scalar_select %p169, %s11, 1
        %s171 = smul.addr %s170, 4
        %s172 = smul.addr %s171, 8
        %s173 = scalar_lea.vmem %s1, %s172
      $region28: #{munet_forward.1} parent=19 // pred_fallthru
        _
    $region20: #{munet_forward.1} parent=5 // pred_fallthru
      _
    %p174 = scmp.le.s32.totalorder 1, %s11
    %p175 = scmp.lt.s32.totalorder %s11, 3
    %p176 = pnand %p174, %p175
    %p177 = pneg %p176
    // Predicated region
    $region29: #{munet_forward.1} parent=5 // pred_check
      _
    $region30: #{munet_forward.1} parent=5 // pred_check_branch
      %179 = sbr.rel (%p176) target = $region32
    $region31: #{munet_forward.1} parent=5 // pred_region
      %s180 = ssub.s32 %s11, 1
      %p181 = scmp.lt.s32.totalorder %s16, 1
      %s182 = scalar_select %p181, %s16, 1
      %s183 = smul.addr %s182, 8
      %s184 = smul.addr %s183, 8
      %s185 = scalar_lea.vmem %s0, %s184
      %p186 = pneg %p37
      %p187 = pneg %p34
      %p188 = scmp.lt.s32.totalorder %s16, 1
      %s189 = scalar_select %p188, %s16, 1
      %s190 = smul.addr %s189, 4
      %s191 = smul.addr %s190, 8
      %s192 = scalar_lea.vmem %s1, %s191
      %p193 = pneg %p63
      %p194 = pneg %p60
      %p195 = pneg %p84
      %p196 = pneg %p81
      %p197 = pneg %p110
      %p198 = pneg %p107
      %p199 = scmp.lt.s32.totalorder %s16, 1
      %s200 = scalar_select %p199, %s16, 1
      %s201 = smul.addr %s200, 4
      %s202 = smul.addr %s201, 8
      %s203 = scalar_lea.vmem %s3, %s202
      %p204 = pneg %p136
      %p205 = pneg %p133
      %p206 = scmp.lt.s32.totalorder %s16, 1
      %s207 = scalar_select %p206, %s16, 1
      %s208 = smul.addr %s207, 8
      %s209 = smul.addr %s208, 8
      %s210 = scalar_lea.vmem %s4, %s209
      %p211 = scmp.lt.s32.totalorder %s16, 1
      %s212 = scalar_select %p211, %s16, 1
      %s213 = smul.addr %s212, 8
      %s214 = smul.addr %s213, 8
      %s215 = scalar_lea.vmem %s0, %s214
      %p216 = scmp.lt.s32.totalorder %s16, 1
      %s217 = scalar_select %p216, %s16, 1
      %s218 = smul.addr %s217, 4
      %s219 = smul.addr %s218, 8
      %s220 = scalar_lea.vmem %s1, %s219
      %p221 = scmp.lt.s32.totalorder %s16, 1
      %s222 = scalar_select %p221, %s16, 1
      %s223 = smul.addr %s222, 4
      %s224 = smul.addr %s223, 8
      %s225 = scalar_lea.vmem %s3, %s224
      %p226 = scmp.lt.s32.totalorder %s16, 1
      %s227 = scalar_select %p226, %s16, 1
      %s228 = smul.addr %s227, 8
      %s229 = smul.addr %s228, 8
      %s230 = scalar_lea.vmem %s4, %s229
      %v231 = vlaneseq
      %v232 = vand.u32 %v231, 127
      %v233 = vadd.s32 %v232, 128
      %vm234 = vcmp.lt.s32.totalorder %v232, 0
      %v235 = vsub.s32 0, %v232
      %v236 = vsel %vm234, %v235, %v232
      %v237 = vshrl.u32 %v236, 4
      %v238 = vand.u32 %v236, 15
      %v239 = vsub.s32 0, %v238
      %v240 = vsel %vm234, %v239, %v238
      %vm241 = vcmp.lt.s32.totalorder %v233, 0
      %v242 = vsub.s32 0, %v233
      %v243 = vsel %vm241, %v242, %v233
      %v244 = vshrl.u32 %v243, 4
      %v245 = vand.u32 %v243, 15
      %v246 = vsub.s32 0, %v245
      %v247 = vsel %vm241, %v246, %v245
      %vm248 = vcmp.ne.s32.totalorder %v240, 0
      %vm249 = vcmp.ne.s32.totalorder %v247, 0
      %vm250 = vcmp.lt.s32.totalorder %v240, 0
      %vm251 = vcmp.lt.s32.totalorder %v247, 0
      %vm252 = vmand %vm250, %vm248
      %vm253 = vmand %vm251, %vm249
      %v254 = vadd.s32 %v240, 16
      %v255 = vadd.s32 %v247, 16
      %v256 = vsel %vm252, %v254, %v240
      %v257 = vsel %vm253, %v255, %v247
      %vm258 = vcmp.ge.s32.totalorder %v256, 1
      %vm259 = vcmp.ge.s32.totalorder %v257, 1
      %vm260 = vcmp.le.s32.totalorder %v256, 14
      %vm261 = vcmp.le.s32.totalorder %v257, 14
      %v262 = vld [vmem:[%s215] sm:$0xff]
      %v263 = vld [vmem:[%s215 + $0x8] sm:$0xff]
      %v264 = vld [vmem:[%s215 + $0x10] sm:$0xff]
      %v265 = vld [vmem:[%s215 + $0x18] sm:$0xff]
      %v266 = vld [vmem:[%s215 + $0x20] sm:$0xff]
      %v267 = vld [vmem:[%s215 + $0x28] sm:$0xff]
      %v268 = vld [vmem:[%s215 + $0x30] sm:$0xff]
      %v269 = vld [vmem:[%s215 + $0x38] sm:$0xff]
      %v270 = vld [vmem:[%s2] sm:$0xff]
      %v271 = vld [vmem:[%s2 + $0x8] sm:$0xff]
      %v272 = vld [vmem:[%s2 + $0x10] sm:$0xff]
      %v273 = vld [vmem:[%s2 + $0x18] sm:$0xff]
      %275 = vset.pattern.permute.xlu0 0
      %276 = vperm.xlu0 %275, %v272
      %v277 = vpop.permute.xlu0 %276
      %280 = vset.pattern.permute.xlu0 0
      %281 = vperm.xlu0 %280, %v273
      %v282 = vpop.permute.xlu0 %281
      %vm284 = vcmask 261120
      %v286 = vsel %vm284, %v270, 0
      %v289 = vsel %vm284, %v271, 0
      %291 = vmatprep.subr.mxu0 0.0
      %292 = vmatpush1.msra.mxu0 0.0
      %293 = vmatprep.subr.mxu0 0.0
      %294 = vmatpush1.msra.mxu0 0.0
      %295 = vmatprep.subr.mxu0 0.0
      %296 = vmatpush1.msra.mxu0 0.0
      %297 = vmatprep.subr.mxu0 0.0
      %298 = vmatpush1.msra.mxu0 0.0
      %299 = vmatprep.subr.mxu0 0.0
      %300 = vmatpush1.msra.mxu0 0.0
      %301 = vmatprep.subr.mxu0 0.0
      %302 = vmatpush1.msra.mxu0 0.0
      %303 = vmatprep.subr.mxu0 0.0
      %304 = vmatpush1.msra.mxu0 0.0
      %305 = vmatprep.subr.mxu0 0.0
      %306 = vmatpush1.msra.mxu0 0.0
      %307 = vmatprep.subr.mxu0 0.0
      %308 = vmatpush1.msra.mxu0 0.0
      %309 = vmatprep.subr.mxu0 0.0
      %310 = vmatpush1.msra.mxu0 0.0
      %311 = vmatprep.subr.mxu0 0.0
      %312 = vmatpush1.msra.mxu0 0.0
      %313 = vmatprep.subr.mxu0 0.0
      %314 = vmatpush1.msra.mxu0 0.0
      %315 = vmatprep.subr.mxu0 %v269
      %316 = vmatpush1.msra.mxu0 %v268
      %317 = vmatprep.subr.mxu0 %v267
      %318 = vmatpush1.msra.mxu0 %v266
      %319 = vmatprep.subr.mxu0 %v265
      %320 = vmatpush1.msra.mxu0 %v264
      %321 = vmatprep.subr.mxu0 %v263
      %322 = vmatpush1.msra.mxu0 %v262
      %323 = vmatprep.subr.mxu0 0.0
      %324 = vmatpush2.msra.mxu0 0.0
      %325 = vmatprep.subr.mxu0 0.0
      %326 = vmatpush2.msra.mxu0 0.0
      %327 = vmatprep.subr.mxu0 0.0
      %328 = vmatpush2.msra.mxu0 0.0
      %329 = vmatprep.subr.mxu0 0.0
      %330 = vmatpush2.msra.mxu0 0.0
      %331 = vmatprep.subr.mxu0 0.0
      %332 = vmatpush2.msra.mxu0 0.0
      %333 = vmatprep.subr.mxu0 0.0
      %334 = vmatpush2.msra.mxu0 0.0
      %335 = vmatprep.subr.mxu0 0.0
      %336 = vmatpush2.msra.mxu0 0.0
      %337 = vmatprep.subr.mxu0 0.0
      %338 = vmatpush2.msra.mxu0 0.0
      %339 = vmatprep.subr.mxu0 0.0
      %340 = vmatpush2.msra.mxu0 0.0
      %341 = vmatprep.subr.mxu0 0.0
      %342 = vmatpush2.msra.mxu0 0.0
      %343 = vmatprep.subr.mxu0 0.0
      %344 = vmatpush2.msra.mxu0 0.0
      %345 = vmatprep.subr.mxu0 0.0
      %346 = vmatpush2.msra.mxu0 0.0
      %347 = vmatprep.subr.mxu0 0.0
      %348 = vmatpush2.msra.mxu0 0.0
      %349 = vmatprep.subr.mxu0 0.0
      %350 = vmatpush2.msra.mxu0 0.0
      %351 = vmatprep.subr.mxu0 0.0
      %352 = vmatpush2.msra.mxu0 0.0
      %353 = vmatprep.subr.mxu0 0.0
      %354 = vmatpush2.msra.mxu0 0.0
      %355 = vmatprep.mubr.f32.mxu0 0.0
      %356 = vmatmul.mubr.f32.gmra.mxu0 %v286
      %v357 = vpop.f32.mrf.mxu0
      %v358 = vadd.f32 %v277, %v357
      %v359 = vpop.f32.mrf.mxu0
      %v360 = vadd.f32 %v277, %v359
      %361 = vmatprep.mubr.f32.mxu0 0.0
      %362 = vmatmul.mubr.f32.gmra.mxu0 %v289
      %v363 = vpop.f32.mrf.mxu0
      %v364 = vadd.f32 %v282, %v363
      %v365 = vpop.f32.mrf.mxu0
      %v366 = vadd.f32 %v282, %v365
      %367 = vdwg.mxu0
      %v368 = vmax.f32 %v358, 0.0
      %v369 = vmax.f32 %v360, 0.0
      %v370 = vmax.f32 %v364, 0.0
      %v371 = vmax.f32 %v366, 0.0
      %v372 = vld [vmem:[%s2 + $0x20] sm:$0xff]
      %v373 = vld [vmem:[%s2 + $0x28] sm:$0xff]
      %375 = vset.pattern.permute.xlu0 0
      %376 = vperm.xlu0 %375, %v373
      %v377 = vpop.permute.xlu0 %376
      %vm379 = vcmask 130048
      %v381 = vsel %vm379, %v372, 0
      %383 = vmatprep.subr.mxu0 0.0
      %384 = vmatpush1.msra.mxu0 0.0
      %385 = vmatprep.subr.mxu0 0.0
      %386 = vmatpush1.msra.mxu0 0.0
      %387 = vmatprep.subr.mxu0 0.0
      %388 = vmatpush1.msra.mxu0 0.0
      %389 = vmatprep.subr.mxu0 0.0
      %390 = vmatpush1.msra.mxu0 0.0
      %391 = vmatprep.subr.mxu0 0.0
      %392 = vmatpush1.msra.mxu0 0.0
      %393 = vmatprep.subr.mxu0 0.0
      %394 = vmatpush1.msra.mxu0 0.0
      %395 = vmatprep.subr.mxu0 0.0
      %396 = vmatpush1.msra.mxu0 0.0
      %397 = vmatprep.subr.mxu0 0.0
      %398 = vmatpush1.msra.mxu0 0.0
      %399 = vmatprep.subr.mxu0 0.0
      %400 = vmatpush1.msra.mxu0 0.0
      %401 = vmatprep.subr.mxu0 0.0
      %402 = vmatpush1.msra.mxu0 0.0
      %403 = vmatprep.subr.mxu0 0.0
      %404 = vmatpush1.msra.mxu0 0.0
      %405 = vmatprep.subr.mxu0 0.0
      %406 = vmatpush1.msra.mxu0 0.0
      %407 = vmatprep.subr.mxu0 0.0
      %408 = vmatpush1.msra.mxu0 0.0
      %409 = vmatprep.subr.mxu0 0.0
      %410 = vmatpush1.msra.mxu0 0.0
      %411 = vmatprep.subr.mxu0 %v371
      %412 = vmatpush1.msra.mxu0 %v370
      %413 = vmatprep.subr.mxu0 %v369
      %414 = vmatpush1.msra.mxu0 %v368
      %415 = vmatprep.subr.mxu0 0.0
      %416 = vmatpush2.msra.mxu0 0.0
      %417 = vmatprep.subr.mxu0 0.0
      %418 = vmatpush2.msra.mxu0 0.0
      %419 = vmatprep.subr.mxu0 0.0
      %420 = vmatpush2.msra.mxu0 0.0
      %421 = vmatprep.subr.mxu0 0.0
      %422 = vmatpush2.msra.mxu0 0.0
      %423 = vmatprep.subr.mxu0 0.0
      %424 = vmatpush2.msra.mxu0 0.0
      %425 = vmatprep.subr.mxu0 0.0
      %426 = vmatpush2.msra.mxu0 0.0
      %427 = vmatprep.subr.mxu0 0.0
      %428 = vmatpush2.msra.mxu0 0.0
      %429 = vmatprep.subr.mxu0 0.0
      %430 = vmatpush2.msra.mxu0 0.0
      %431 = vmatprep.subr.mxu0 0.0
      %432 = vmatpush2.msra.mxu0 0.0
      %433 = vmatprep.subr.mxu0 0.0
      %434 = vmatpush2.msra.mxu0 0.0
      %435 = vmatprep.subr.mxu0 0.0
      %436 = vmatpush2.msra.mxu0 0.0
      %437 = vmatprep.subr.mxu0 0.0
      %438 = vmatpush2.msra.mxu0 0.0
      %439 = vmatprep.subr.mxu0 0.0
      %440 = vmatpush2.msra.mxu0 0.0
      %441 = vmatprep.subr.mxu0 0.0
      %442 = vmatpush2.msra.mxu0 0.0
      %443 = vmatprep.subr.mxu0 0.0
      %444 = vmatpush2.msra.mxu0 0.0
      %445 = vmatprep.subr.mxu0 0.0
      %446 = vmatpush2.msra.mxu0 0.0
      %447 = vmatprep.mubr.f32.mxu0 0.0
      %448 = vmatmul.mubr.f32.gmra.mxu0 %v381
      %v449 = vpop.f32.mrf.mxu0
      %v450 = vadd.f32 %v377, %v449
      %v451 = vpop.f32.mrf.mxu0
      %v452 = vadd.f32 %v377, %v451
      %453 = vdwg.mxu0
      %v454 = vmax.f32 %v450, 0.0
      %v455 = vmax.f32 %v452, 0.0
      %v456 = vld [vmem:[%s2 + $0x30] sm:$0xff]
      %v457 = vld [vmem:[%s2 + $0x38] sm:$0xff]
      %v458 = vld [vmem:[%s2 + $0x40] sm:$0xff]
      %v459 = vld [vmem:[%s2 + $0x48] sm:$0xff]
      %461 = vset.pattern.permute.xlu0 0
      %462 = vperm.xlu0 %461, %v458
      %v463 = vpop.permute.xlu0 %462
      %466 = vset.pattern.permute.xlu0 0
      %467 = vperm.xlu0 %466, %v459
      %v468 = vpop.permute.xlu0 %467
      %vm470 = vcmask 64512
      %v472 = vsel %vm470, %v456, 0
      %v475 = vsel %vm470, %v457, 0
      %477 = vmatprep.subr.mxu0 0.0
      %478 = vmatpush1.msra.mxu0 0.0
      %479 = vmatprep.subr.mxu0 0.0
      %480 = vmatpush1.msra.mxu0 0.0
      %481 = vmatprep.subr.mxu0 0.0
      %482 = vmatpush1.msra.mxu0 0.0
      %483 = vmatprep.subr.mxu0 0.0
      %484 = vmatpush1.msra.mxu0 0.0
      %485 = vmatprep.subr.mxu0 0.0
      %486 = vmatpush1.msra.mxu0 0.0
      %487 = vmatprep.subr.mxu0 0.0
      %488 = vmatpush1.msra.mxu0 0.0
      %489 = vmatprep.subr.mxu0 0.0
      %490 = vmatpush1.msra.mxu0 0.0
      %491 = vmatprep.subr.mxu0 0.0
      %492 = vmatpush1.msra.mxu0 0.0
      %493 = vmatprep.subr.mxu0 0.0
      %494 = vmatpush1.msra.mxu0 0.0
      %495 = vmatprep.subr.mxu0 0.0
      %496 = vmatpush1.msra.mxu0 0.0
      %497 = vmatprep.subr.mxu0 0.0
      %498 = vmatpush1.msra.mxu0 0.0
      %499 = vmatprep.subr.mxu0 0.0
      %500 = vmatpush1.msra.mxu0 0.0
      %501 = vmatprep.subr.mxu0 0.0
      %502 = vmatpush1.msra.mxu0 0.0
      %503 = vmatprep.subr.mxu0 0.0
      %504 = vmatpush1.msra.mxu0 0.0
      %505 = vmatprep.subr.mxu0 0.0
      %506 = vmatpush1.msra.mxu0 0.0
      %507 = vmatprep.subr.mxu0 %v455
      %508 = vmatpush1.msra.mxu0 %v454
      %509 = vmatprep.subr.mxu0 0.0
      %510 = vmatpush2.msra.mxu0 0.0
      %511 = vmatprep.subr.mxu0 0.0
      %512 = vmatpush2.msra.mxu0 0.0
      %513 = vmatprep.subr.mxu0 0.0
      %514 = vmatpush2.msra.mxu0 0.0
      %515 = vmatprep.subr.mxu0 0.0
      %516 = vmatpush2.msra.mxu0 0.0
      %517 = vmatprep.subr.mxu0 0.0
      %518 = vmatpush2.msra.mxu0 0.0
      %519 = vmatprep.subr.mxu0 0.0
      %520 = vmatpush2.msra.mxu0 0.0
      %521 = vmatprep.subr.mxu0 0.0
      %522 = vmatpush2.msra.mxu0 0.0
      %523 = vmatprep.subr.mxu0 0.0
      %524 = vmatpush2.msra.mxu0 0.0
      %525 = vmatprep.subr.mxu0 0.0
      %526 = vmatpush2.msra.mxu0 0.0
      %527 = vmatprep.subr.mxu0 0.0
      %528 = vmatpush2.msra.mxu0 0.0
      %529 = vmatprep.subr.mxu0 0.0
      %530 = vmatpush2.msra.mxu0 0.0
      %531 = vmatprep.subr.mxu0 0.0
      %532 = vmatpush2.msra.mxu0 0.0
      %533 = vmatprep.subr.mxu0 0.0
      %534 = vmatpush2.msra.mxu0 0.0
      %535 = vmatprep.subr.mxu0 0.0
      %536 = vmatpush2.msra.mxu0 0.0
      %537 = vmatprep.subr.mxu0 0.0
      %538 = vmatpush2.msra.mxu0 0.0
      %539 = vmatprep.subr.mxu0 0.0
      %540 = vmatpush2.msra.mxu0 0.0
      %541 = vmatprep.mubr.f32.mxu0 0.0
      %542 = vmatmul.mubr.f32.gmra.mxu0 %v472
      %v543 = vpop.f32.mrf.mxu0
      %v544 = vadd.f32 %v463, %v543
      %v545 = vpop.f32.mrf.mxu0
      %v546 = vadd.f32 %v463, %v545
      %547 = vmatprep.mubr.f32.mxu0 0.0
      %548 = vmatmul.mubr.f32.gmra.mxu0 %v475
      %v549 = vpop.f32.mrf.mxu0
      %v550 = vadd.f32 %v468, %v549
      %v551 = vpop.f32.mrf.mxu0
      %v552 = vadd.f32 %v468, %v551
      %553 = vdwg.mxu0
      %v554 = vld [vmem:[%s220] sm:$0xff]
      %v555 = vld [vmem:[%s220 + $0x8] sm:$0xff]
      %v556 = vld [vmem:[%s220 + $0x10] sm:$0xff]
      %v557 = vsel %vm258, 1, 0
      %v558 = vsel %vm259, 1, 0
      %vm559 = vcmp.eq.s32.totalorder %v557, 1
      %vm560 = vcmp.eq.s32.totalorder %v558, 1
      %564 = vrot.lane.b32.xlu0 %v554, 17
      %v565 = vpop.permute.xlu0 %564
      %566 = vrot.lane.b32.xlu0 %v555, 17
      %v567 = vpop.permute.xlu0 %566
      %568 = vrot.lane.b32.xlu0 %v556, 17
      %v569 = vpop.permute.xlu0 %568
      %vm570 = vcmask 138240
      %v571 = vsel %vm570, %v565, %v567
      %v572 = vsel %vm570, %v567, %v569
      %v575 = vsel %vm559, %v571, 0.0
      %v576 = vsel %vm560, %v572, 0.0
      %v577 = vsel %vm260, 1, 0
      %v578 = vsel %vm261, 1, 0
      %vm579 = vcmp.eq.s32.totalorder %v577, 1
      %vm580 = vcmp.eq.s32.totalorder %v578, 1
      %581 = vrot.lane.b32.xlu0 %v554, 15
      %v582 = vpop.permute.xlu0 %581
      %583 = vrot.lane.b32.xlu0 %v555, 15
      %v584 = vpop.permute.xlu0 %583
      %585 = vrot.lane.b32.xlu0 %v556, 15
      %v586 = vpop.permute.xlu0 %585
      %vm587 = vcmask 121856
      %v588 = vsel %vm587, %v582, %v584
      %v589 = vsel %vm587, %v584, %v586
      %v592 = vsel %vm579, %v588, 0.0
      %v593 = vsel %vm580, %v589, 0.0
      %594 = vrot.lane.b32.xlu0 %v554, 1
      %v595 = vpop.permute.xlu0 %594
      %596 = vrot.lane.b32.xlu0 %v555, 1
      %v597 = vpop.permute.xlu0 %596
      %598 = vrot.lane.b32.xlu0 %v556, 1
      %v599 = vpop.permute.xlu0 %598
      %vm600 = vcmask 7168
      %v601 = vsel %vm600, %v595, %v597
      %v602 = vsel %vm600, %v597, %v599
      %v605 = vsel %vm559, %v601, 0.0
      %v606 = vsel %vm560, %v602, 0.0
      %v607 = vld [vmem:[%s220 + $0x8] sm:$0xff]
      %v608 = vld [vmem:[%s220 + $0x10] sm:$0xff]
      %v609 = vld [vmem:[%s220 + $0x18] sm:$0xff]
      %613 = vrot.lane.b32.xlu0 %v607, 127
      %v614 = vpop.permute.xlu0 %613
      %615 = vrot.lane.b32.xlu0 %v608, 127
      %v616 = vpop.permute.xlu0 %615
      %617 = vrot.lane.b32.xlu0 %v609, 127
      %v618 = vpop.permute.xlu0 %617
      %vm619 = vcmask 1039360
      %v620 = vsel %vm619, %v614, %v616
      %v621 = vsel %vm619, %v616, %v618
      %v624 = vsel %vm579, %v620, 0.0
      %v625 = vsel %vm580, %v621, 0.0
      %626 = vrot.lane.b32.xlu0 %v607, 113
      %v627 = vpop.permute.xlu0 %626
      %628 = vrot.lane.b32.xlu0 %v608, 113
      %v629 = vpop.permute.xlu0 %628
      %630 = vrot.lane.b32.xlu0 %v609, 113
      %v631 = vpop.permute.xlu0 %630
      %vm632 = vcmask 924672
      %v633 = vsel %vm632, %v627, %v629
      %v634 = vsel %vm632, %v629, %v631
      %v637 = vsel %vm559, %v633, 0.0
      %v638 = vsel %vm560, %v634, 0.0
      %639 = vrot.lane.b32.xlu0 %v607, 111
      %v640 = vpop.permute.xlu0 %639
      %641 = vrot.lane.b32.xlu0 %v608, 111
      %v642 = vpop.permute.xlu0 %641
      %643 = vrot.lane.b32.xlu0 %v609, 111
      %v644 = vpop.permute.xlu0 %643
      %vm645 = vcmask 908288
      %v646 = vsel %vm645, %v640, %v642
      %v647 = vsel %vm645, %v642, %v644
      %v650 = vsel %vm579, %v646, 0.0
      %v651 = vsel %vm580, %v647, 0.0
      %652 = vrot.lane.b32.xlu0 %v554, 16
      %v653 = vpop.permute.xlu0 %652
      %654 = vrot.lane.b32.xlu0 %v555, 16
      %v655 = vpop.permute.xlu0 %654
      %656 = vrot.lane.b32.xlu0 %v556, 16
      %v657 = vpop.permute.xlu0 %656
      %v658 = vsel %vm379, %v653, %v655
      %v659 = vsel %vm379, %v655, %v657
      %662 = vrot.lane.b32.xlu0 %v607, 112
      %v663 = vpop.permute.xlu0 %662
      %664 = vrot.lane.b32.xlu0 %v608, 112
      %v665 = vpop.permute.xlu0 %664
      %666 = vrot.lane.b32.xlu0 %v609, 112
      %v667 = vpop.permute.xlu0 %666
      %vm668 = vcmask 916480
      %v669 = vsel %vm668, %v663, %v665
      %v670 = vsel %vm668, %v665, %v667
      %v673 = vld [vmem:[%s2 + $0x50] sm:$0xf]
      %v674 = vld [vmem:[%s2 + $0x58] sm:$0xf]
      %676 = vset.pattern.permute.xlu0 0
      %677 = vperm.xlu0 %676, %v674
      %v678 = vpop.permute.xlu0 %677
      %vm680 = vcmask 588800
      %v682 = vsel %vm680, %v673, 0
      %684 = vmatprep.subr.mxu0 0.0
      %685 = vmatpush1.msra.mxu0 0.0
      %686 = vmatprep.subr.mxu0 0.0
      %687 = vmatpush1.msra.mxu0 0.0
      %688 = vmatprep.subr.mxu0 0.0
      %689 = vmatpush1.msra.mxu0 0.0
      %690 = vmatprep.subr.mxu0 0.0
      %691 = vmatpush1.msra.mxu0 0.0
      %692 = vmatprep.subr.mxu0 0.0
      %693 = vmatpush1.msra.mxu0 0.0
      %694 = vmatprep.subr.mxu0 0.0
      %695 = vmatpush1.msra.mxu0 0.0
      %696 = vmatprep.subr.mxu0 0.0
      %697 = vmatpush1.msra.mxu0 0.0
      %698 = vmatprep.subr.mxu0 %v651
      %699 = vmatpush1.msra.mxu0 %v650
      %700 = vmatprep.subr.mxu0 %v670
      %701 = vmatpush1.msra.mxu0 %v669
      %702 = vmatprep.subr.mxu0 %v638
      %703 = vmatpush1.msra.mxu0 %v637
      %704 = vmatprep.subr.mxu0 %v625
      %705 = vmatpush1.msra.mxu0 %v624
      %706 = vmatprep.subr.mxu0 %v556
      %707 = vmatpush1.msra.mxu0 %v555
      %708 = vmatprep.subr.mxu0 %v606
      %709 = vmatpush1.msra.mxu0 %v605
      %710 = vmatprep.subr.mxu0 %v593
      %711 = vmatpush1.msra.mxu0 %v592
      %712 = vmatprep.subr.mxu0 %v659
      %713 = vmatpush1.msra.mxu0 %v658
      %714 = vmatprep.subr.mxu0 %v576
      %715 = vmatpush1.msra.mxu0 %v575
      %716 = vmatprep.subr.mxu0 0.0
      %717 = vmatpush2.msra.mxu0 0.0
      %718 = vmatprep.subr.mxu0 0.0
      %719 = vmatpush2.msra.mxu0 0.0
      %720 = vmatprep.subr.mxu0 0.0
      %721 = vmatpush2.msra.mxu0 0.0
      %722 = vmatprep.subr.mxu0 0.0
      %723 = vmatpush2.msra.mxu0 0.0
      %724 = vmatprep.subr.mxu0 0.0
      %725 = vmatpush2.msra.mxu0 0.0
      %726 = vmatprep.subr.mxu0 0.0
      %727 = vmatpush2.msra.mxu0 0.0
      %728 = vmatprep.subr.mxu0 0.0
      %729 = vmatpush2.msra.mxu0 0.0
      %730 = vmatprep.subr.mxu0 0.0
      %731 = vmatpush2.msra.mxu0 0.0
      %732 = vmatprep.subr.mxu0 0.0
      %733 = vmatpush2.msra.mxu0 0.0
      %734 = vmatprep.subr.mxu0 0.0
      %735 = vmatpush2.msra.mxu0 0.0
      %736 = vmatprep.subr.mxu0 0.0
      %737 = vmatpush2.msra.mxu0 0.0
      %738 = vmatprep.subr.mxu0 0.0
      %739 = vmatpush2.msra.mxu0 0.0
      %740 = vmatprep.subr.mxu0 0.0
      %741 = vmatpush2.msra.mxu0 0.0
      %742 = vmatprep.subr.mxu0 0.0
      %743 = vmatpush2.msra.mxu0 0.0
      %744 = vmatprep.subr.mxu0 0.0
      %745 = vmatpush2.msra.mxu0 0.0
      %746 = vmatprep.subr.mxu0 0.0
      %747 = vmatpush2.msra.mxu0 0.0
      %748 = vmatprep.mubr.f32.mxu0 0.0
      %749 = vmatmul.mubr.f32.gmra.mxu0 %v682
      %v750 = vpop.f32.mrf.mxu0
      %v751 = vadd.f32 %v678, %v750
      %v752 = vpop.f32.mrf.mxu0
      %v753 = vadd.f32 %v678, %v752
      %754 = vdwg.mxu0
      %v755 = vmax.f32 %v751, 0.0
      %v756 = vmax.f32 %v753, 0.0
      %757 = vst [vmem:[#allocation2] sm:$0xf] 0.0
      %758 = vst [vmem:[#allocation2 + $0xc] sm:$0xf] 0.0
      %v761 = vcombine.low %v755, %v756
      %763 = vst [vmem:[#allocation2 + $0x4] sm:$0xff] %v761
      %v764 = vld [vmem:[#allocation2] sm:$0xff]
      %v765 = vld [vmem:[#allocation2 + $0x8] sm:$0xf]
      %v768 = vcombine.high %v764, %v764
      %769 = vrot.lane.b32.xlu0 %v764, 17
      %v770 = vpop.permute.xlu0 %769
      %771 = vrot.lane.b32.xlu0 %v768, 17
      %v772 = vpop.permute.xlu0 %771
      %773 = vrot.lane.b32.xlu0 %v765, 17
      %v774 = vpop.permute.xlu0 %773
      %v775 = vsel %vm570, %v770, %v772
      %v776 = vsel %vm570, %v772, %v774
      %v779 = vsel %vm559, %v775, 0.0
      %v780 = vsel %vm560, %v776, 0.0
      %781 = vrot.lane.b32.xlu0 %v764, 15
      %v782 = vpop.permute.xlu0 %781
      %783 = vrot.lane.b32.xlu0 %v768, 15
      %v784 = vpop.permute.xlu0 %783
      %785 = vrot.lane.b32.xlu0 %v765, 15
      %v786 = vpop.permute.xlu0 %785
      %v787 = vsel %vm587, %v782, %v784
      %v788 = vsel %vm587, %v784, %v786
      %v791 = vsel %vm579, %v787, 0.0
      %v792 = vsel %vm580, %v788, 0.0
      %793 = vrot.lane.b32.xlu0 %v764, 1
      %v794 = vpop.permute.xlu0 %793
      %795 = vrot.lane.b32.xlu0 %v768, 1
      %v796 = vpop.permute.xlu0 %795
      %797 = vrot.lane.b32.xlu0 %v765, 1
      %v798 = vpop.permute.xlu0 %797
      %v799 = vsel %vm600, %v794, %v796
      %v800 = vsel %vm600, %v796, %v798
      %v803 = vsel %vm559, %v799, 0.0
      %v804 = vsel %vm560, %v800, 0.0
      %v805 = vld [vmem:[#allocation2 + $0x4] sm:$0xff]
      %v806 = vld [vmem:[#allocation2 + $0x4] sm:$0xff]
      %v807 = vld [vmem:[#allocation2 + $0xc] sm:$0xf]
      %v810 = vcombine.high %v806, %v806
      %811 = vrot.lane.b32.xlu0 %v806, 127
      %v812 = vpop.permute.xlu0 %811
      %813 = vrot.lane.b32.xlu0 %v810, 127
      %v814 = vpop.permute.xlu0 %813
      %815 = vrot.lane.b32.xlu0 %v807, 127
      %v816 = vpop.permute.xlu0 %815
      %v817 = vsel %vm619, %v812, %v814
      %v818 = vsel %vm619, %v814, %v816
      %v821 = vsel %vm579, %v817, 0.0
      %v822 = vsel %vm580, %v818, 0.0
      %823 = vrot.lane.b32.xlu0 %v806, 113
      %v824 = vpop.permute.xlu0 %823
      %825 = vrot.lane.b32.xlu0 %v810, 113
      %v826 = vpop.permute.xlu0 %825
      %827 = vrot.lane.b32.xlu0 %v807, 113
      %v828 = vpop.permute.xlu0 %827
      %v829 = vsel %vm632, %v824, %v826
      %v830 = vsel %vm632, %v826, %v828
      %v833 = vsel %vm559, %v829, 0.0
      %v834 = vsel %vm560, %v830, 0.0
      %835 = vrot.lane.b32.xlu0 %v806, 111
      %v836 = vpop.permute.xlu0 %835
      %837 = vrot.lane.b32.xlu0 %v810, 111
      %v838 = vpop.permute.xlu0 %837
      %839 = vrot.lane.b32.xlu0 %v807, 111
      %v840 = vpop.permute.xlu0 %839
      %v841 = vsel %vm645, %v836, %v838
      %v842 = vsel %vm645, %v838, %v840
      %v845 = vsel %vm579, %v841, 0.0
      %v846 = vsel %vm580, %v842, 0.0
      %v847 = vcombine.low %v764, %v764
      %v848 = vcombine.low %v765, %v765
      %849 = vrot.lane.b32.xlu0 %v847, 16
      %v850 = vpop.permute.xlu0 %849
      %851 = vrot.lane.b32.xlu0 %v764, 16
      %v852 = vpop.permute.xlu0 %851
      %853 = vrot.lane.b32.xlu0 %v848, 16
      %v854 = vpop.permute.xlu0 %853
      %v855 = vsel %vm379, %v850, %v852
      %v856 = vsel %vm379, %v852, %v854
      %v861 = vrot.slane %v803, 4
      %v862 = vrot.slane %v804, 4
      %v866 = vcombine.high %v805, %v805
      %v870 = vrot.slane %v821, 4
      %v871 = vrot.slane %v822, 4
      %v874 = vcombine.low %v806, %v806
      %v875 = vcombine.low %v807, %v807
      %876 = vrot.lane.b32.xlu0 %v874, 112
      %v877 = vpop.permute.xlu0 %876
      %878 = vrot.lane.b32.xlu0 %v806, 112
      %v879 = vpop.permute.xlu0 %878
      %880 = vrot.lane.b32.xlu0 %v875, 112
      %v881 = vpop.permute.xlu0 %880
      %v882 = vsel %vm668, %v877, %v879
      %v883 = vsel %vm668, %v879, %v881
      %vm886 = vcmask 1043456
      %v887 = vsel %vm886, %v779, %v855
      %v888 = vsel %vm886, %v780, %v856
      %v889 = vsel %vm886, %v791, %v861
      %v890 = vsel %vm886, %v792, %v862
      %v891 = vsel %vm886, %v805, %v870
      %v892 = vsel %vm886, %v866, %v871
      %v893 = vsel %vm886, %v833, %v882
      %v894 = vsel %vm886, %v834, %v883
      %v895 = vld [vmem:[%s2 + $0x60] sm:$0x3]
      %v896 = vld [vmem:[%s2 + $0x68] sm:$0x3]
      %898 = vset.pattern.permute.xlu0 0
      %899 = vperm.xlu0 %898, %v896
      %v900 = vpop.permute.xlu0 %899
      %vm902 = vcmask 293888
      %v904 = vsel %vm902, %v895, 0
      %v907 = vsel %vm886, %v845, 0
      %v910 = vsel %vm886, %v846, 0
      %912 = vmatprep.subr.mxu0 0.0
      %913 = vmatpush1.msra.mxu0 0.0
      %914 = vmatprep.subr.mxu0 0.0
      %915 = vmatpush1.msra.mxu0 0.0
      %916 = vmatprep.subr.mxu0 0.0
      %917 = vmatpush1.msra.mxu0 0.0
      %918 = vmatprep.subr.mxu0 0.0
      %919 = vmatpush1.msra.mxu0 0.0
      %920 = vmatprep.subr.mxu0 0.0
      %921 = vmatpush1.msra.mxu0 0.0
      %922 = vmatprep.subr.mxu0 0.0
      %923 = vmatpush1.msra.mxu0 0.0
      %924 = vmatprep.subr.mxu0 0.0
      %925 = vmatpush1.msra.mxu0 0.0
      %926 = vmatprep.subr.mxu0 0.0
      %927 = vmatpush1.msra.mxu0 0.0
      %928 = vmatprep.subr.mxu0 0.0
      %929 = vmatpush1.msra.mxu0 0.0
      %930 = vmatprep.subr.mxu0 0.0
      %931 = vmatpush1.msra.mxu0 0.0
      %932 = vmatprep.subr.mxu0 0.0
      %933 = vmatpush1.msra.mxu0 0.0
      %934 = vmatprep.subr.mxu0 %v910
      %935 = vmatpush1.msra.mxu0 %v907
      %936 = vmatprep.subr.mxu0 %v894
      %937 = vmatpush1.msra.mxu0 %v893
      %938 = vmatprep.subr.mxu0 %v892
      %939 = vmatpush1.msra.mxu0 %v891
      %940 = vmatprep.subr.mxu0 %v890
      %941 = vmatpush1.msra.mxu0 %v889
      %942 = vmatprep.subr.mxu0 %v888
      %943 = vmatpush1.msra.mxu0 %v887
      %944 = vmatprep.subr.mxu0 0.0
      %945 = vmatpush2.msra.mxu0 0.0
      %946 = vmatprep.subr.mxu0 0.0
      %947 = vmatpush2.msra.mxu0 0.0
      %948 = vmatprep.subr.mxu0 0.0
      %949 = vmatpush2.msra.mxu0 0.0
      %950 = vmatprep.subr.mxu0 0.0
      %951 = vmatpush2.msra.mxu0 0.0
      %952 = vmatprep.subr.mxu0 0.0
      %953 = vmatpush2.msra.mxu0 0.0
      %954 = vmatprep.subr.mxu0 0.0
      %955 = vmatpush2.msra.mxu0 0.0
      %956 = vmatprep.subr.mxu0 0.0
      %957 = vmatpush2.msra.mxu0 0.0
      %958 = vmatprep.subr.mxu0 0.0
      %959 = vmatpush2.msra.mxu0 0.0
      %960 = vmatprep.subr.mxu0 0.0
      %961 = vmatpush2.msra.mxu0 0.0
      %962 = vmatprep.subr.mxu0 0.0
      %963 = vmatpush2.msra.mxu0 0.0
      %964 = vmatprep.subr.mxu0 0.0
      %965 = vmatpush2.msra.mxu0 0.0
      %966 = vmatprep.subr.mxu0 0.0
      %967 = vmatpush2.msra.mxu0 0.0
      %968 = vmatprep.subr.mxu0 0.0
      %969 = vmatpush2.msra.mxu0 0.0
      %970 = vmatprep.subr.mxu0 0.0
      %971 = vmatpush2.msra.mxu0 0.0
      %972 = vmatprep.subr.mxu0 0.0
      %973 = vmatpush2.msra.mxu0 0.0
      %974 = vmatprep.subr.mxu0 0.0
      %975 = vmatpush2.msra.mxu0 0.0
      %976 = vmatprep.mubr.f32.mxu0 0.0
      %977 = vmatmul.mubr.f32.gmra.mxu0 %v904
      %v978 = vpop.f32.mrf.mxu0
      %v979 = vadd.f32 %v900, %v978
      %v980 = vpop.f32.mrf.mxu0
      %v981 = vadd.f32 %v900, %v980
      %982 = vdwg.mxu0
      %v983 = vmax.f32 %v979, 0.0
      %v984 = vmax.f32 %v981, 0.0
      %v985 = vld [vmem:[%s2 + $0x70] sm:$0xff]
      %v986 = vld [vmem:[%s2 + $0x78] sm:$0xff]
      %v987 = vld [vmem:[%s2 + $0x80] sm:$0xff]
      %v988 = vld [vmem:[%s2 + $0x88] sm:$0xff]
      %990 = vset.pattern.permute.xlu0 0
      %991 = vperm.xlu0 %990, %v987
      %v992 = vpop.permute.xlu0 %991
      %995 = vset.pattern.permute.xlu0 0
      %996 = vperm.xlu0 %995, %v988
      %v997 = vpop.permute.xlu0 %996
      %vm999 = vcmask 15360
      %v1001 = vsel %vm999, %v985, 0
      %v1004 = vsel %vm999, %v986, 0
      %vm1006 = vcmask 1041408
      %v1008 = vsel %vm1006, %v983, 0
      %v1011 = vsel %vm1006, %v984, 0
      %1013 = vmatprep.subr.mxu0 0.0
      %1014 = vmatpush1.msra.mxu0 0.0
      %1015 = vmatprep.subr.mxu0 0.0
      %1016 = vmatpush1.msra.mxu0 0.0
      %1017 = vmatprep.subr.mxu0 0.0
      %1018 = vmatpush1.msra.mxu0 0.0
      %1019 = vmatprep.subr.mxu0 0.0
      %1020 = vmatpush1.msra.mxu0 0.0
      %1021 = vmatprep.subr.mxu0 0.0
      %1022 = vmatpush1.msra.mxu0 0.0
      %1023 = vmatprep.subr.mxu0 0.0
      %1024 = vmatpush1.msra.mxu0 0.0
      %1025 = vmatprep.subr.mxu0 0.0
      %1026 = vmatpush1.msra.mxu0 0.0
      %1027 = vmatprep.subr.mxu0 0.0
      %1028 = vmatpush1.msra.mxu0 0.0
      %1029 = vmatprep.subr.mxu0 0.0
      %1030 = vmatpush1.msra.mxu0 0.0
      %1031 = vmatprep.subr.mxu0 0.0
      %1032 = vmatpush1.msra.mxu0 0.0
      %1033 = vmatprep.subr.mxu0 0.0
      %1034 = vmatpush1.msra.mxu0 0.0
      %1035 = vmatprep.subr.mxu0 0.0
      %1036 = vmatpush1.msra.mxu0 0.0
      %1037 = vmatprep.subr.mxu0 0.0
      %1038 = vmatpush1.msra.mxu0 0.0
      %1039 = vmatprep.subr.mxu0 0.0
      %1040 = vmatpush1.msra.mxu0 0.0
      %1041 = vmatprep.subr.mxu0 0.0
      %1042 = vmatpush1.msra.mxu0 0.0
      %1043 = vmatprep.subr.mxu0 %v1011
      %1044 = vmatpush1.msra.mxu0 %v1008
      %1045 = vmatprep.subr.mxu0 0.0
      %1046 = vmatpush2.msra.mxu0 0.0
      %1047 = vmatprep.subr.mxu0 0.0
      %1048 = vmatpush2.msra.mxu0 0.0
      %1049 = vmatprep.subr.mxu0 0.0
      %1050 = vmatpush2.msra.mxu0 0.0
      %1051 = vmatprep.subr.mxu0 0.0
      %1052 = vmatpush2.msra.mxu0 0.0
      %1053 = vmatprep.subr.mxu0 0.0
      %1054 = vmatpush2.msra.mxu0 0.0
      %1055 = vmatprep.subr.mxu0 0.0
      %1056 = vmatpush2.msra.mxu0 0.0
      %1057 = vmatprep.subr.mxu0 0.0
      %1058 = vmatpush2.msra.mxu0 0.0
      %1059 = vmatprep.subr.mxu0 0.0
      %1060 = vmatpush2.msra.mxu0 0.0
      %1061 = vmatprep.subr.mxu0 0.0
      %1062 = vmatpush2.msra.mxu0 0.0
      %1063 = vmatprep.subr.mxu0 0.0
      %1064 = vmatpush2.msra.mxu0 0.0
      %1065 = vmatprep.subr.mxu0 0.0
      %1066 = vmatpush2.msra.mxu0 0.0
      %1067 = vmatprep.subr.mxu0 0.0
      %1068 = vmatpush2.msra.mxu0 0.0
      %1069 = vmatprep.subr.mxu0 0.0
      %1070 = vmatpush2.msra.mxu0 0.0
      %1071 = vmatprep.subr.mxu0 0.0
      %1072 = vmatpush2.msra.mxu0 0.0
      %1073 = vmatprep.subr.mxu0 0.0
      %1074 = vmatpush2.msra.mxu0 0.0
      %1075 = vmatprep.subr.mxu0 0.0
      %1076 = vmatpush2.msra.mxu0 0.0
      %1077 = vmatprep.mubr.f32.mxu0 0.0
      %1078 = vmatmul.mubr.f32.gmra.mxu0 %v1001
      %v1079 = vpop.f32.mrf.mxu0
      %v1080 = vadd.f32 %v992, %v1079
      %v1081 = vpop.f32.mrf.mxu0
      %v1082 = vadd.f32 %v992, %v1081
      %1083 = vmatprep.mubr.f32.mxu0 0.0
      %1084 = vmatmul.mubr.f32.gmra.mxu0 %v1004
      %v1085 = vpop.f32.mrf.mxu0
      %v1086 = vadd.f32 %v997, %v1085
      %v1087 = vpop.f32.mrf.mxu0
      %v1088 = vadd.f32 %v997, %v1087
      %1089 = vdwg.mxu0
      %v1090 = vadd.f32 %v1080, %v1082
      %1091 = vadd.xlane.f32.xlu0 %v1090
      %v1092 = vpop.xlane.xlu0 %1091
      %v1093 = vadd.f32 %v1086, %v1088
      %1094 = vadd.xlane.f32.xlu0 %v1093
      %v1095 = vpop.xlane.xlu0 %1094
      %v1096 = vrcp.pop 256.0
      %v1097 = vmul.f32 %v1092, %v1096
      %v1098 = vmul.f32 %v1095, %v1096
      %v1099 = vld [vmem:[%s2 + $0x90] sm:$0xff]
      %v1100 = vld [vmem:[%s2 + $0x98] sm:$0xff]
      %v1101 = vmul.f32 %v1097, %v1099
      %v1102 = vmul.f32 %v1098, %v1100
      %v1103 = vsel %vm600, %v1101, 0.0
      %v1104 = vsel %vm600, %v1102, 0.0
      %v1105 = vadd.f32 %v1103, %v1104
      %v1106 = vrot.slane %v1105, 4
      %v1107 = vadd.f32 %v1105, %v1106
      %v1108 = vrot.slane %v1107, 2
      %v1109 = vadd.f32 %v1107, %v1108
      %v1110 = vrot.slane %v1109, 1
      %v1111 = vadd.f32 %v1109, %v1110
      %v1112 = vld [vmem:[%s2 + $0xa0] sm:$0x1]
      %v1113 = vadd.f32 %v1111, %v1112
      %v1114 = vmax.f32 %v1113, 0.0
      %v1115 = vld [vmem:[%s2 + $0xa8] sm:$0xff]
      %v1116 = vld [vmem:[%s2 + $0xb0] sm:$0xff]
      %v1117 = vlaneseq
      %v1118 = vshrl.u32 %v1117, 7
      %v1119 = vsub.s32 0, %v1118
      %v1120 = vrot.slane %v1114, %v1119
      %v1121 = vmul.f32 %v1115, %v1120
      %v1122 = vmul.f32 %v1116, %v1120
      %v1123 = vadd.f32 %v1121, 0.0
      %v1124 = vadd.f32 %v1122, 0.0
      %v1125 = vld [vmem:[%s2 + $0xb8] sm:$0xff]
      %v1126 = vld [vmem:[%s2 + $0xc0] sm:$0xff]
      %v1127 = vadd.f32 %v1123, %v1125
      %v1128 = vadd.f32 %v1124, %v1126
      %v1129 = vxor.u32 %v1127, 2147483648
      %v1130 = vxor.u32 %v1128, 2147483648
      %v1131 = vmul.f32 %v1129, 1.442695
      %v1132 = vpow.pop %v1131
      %v1133 = vmul.f32 %v1130, 1.442695
      %v1134 = vpow.pop %v1133
      %v1135 = vadd.f32 %v1132, 1.0
      %v1136 = vadd.f32 %v1134, 1.0
      %v1137 = vrcp.pop %v1135
      %v1138 = vmul.f32 1.0, %v1137
      %v1139 = vrcp.pop %v1136
      %v1140 = vmul.f32 1.0, %v1139
      %1142 = vset.pattern.permute.xlu0 0
      %1143 = vperm.xlu0 %1142, %v1138
      %v1144 = vpop.permute.xlu0 %1143
      %1147 = vset.pattern.permute.xlu0 0
      %1148 = vperm.xlu0 %1147, %v1140
      %v1149 = vpop.permute.xlu0 %1148
      %v1151 = vmul.f32 %v1080, %v1144
      %v1152 = vmul.f32 %v1082, %v1144
      %v1153 = vmul.f32 %v1086, %v1149
      %v1154 = vmul.f32 %v1088, %v1149
      %v1155 = vmul.f32 %v544, %v1151
      %v1156 = vmul.f32 %v546, %v1152
      %v1157 = vmul.f32 %v550, %v1153
      %v1158 = vmul.f32 %v552, %v1154
      %v1159 = vld [vmem:[%s2 + $0xc8] sm:$0xff]
      %v1160 = vld [vmem:[%s2 + $0xd0] sm:$0xff]
      %1162 = vset.pattern.permute.xlu0 0
      %1163 = vperm.xlu0 %1162, %v1160
      %v1164 = vpop.permute.xlu0 %1163
      %v1167 = vsel %vm379, %v1159, 0
      %1169 = vmatprep.subr.mxu0 0.0
      %1170 = vmatpush1.msra.mxu0 0.0
      %1171 = vmatprep.subr.mxu0 0.0
      %1172 = vmatpush1.msra.mxu0 0.0
      %1173 = vmatprep.subr.mxu0 0.0
      %1174 = vmatpush1.msra.mxu0 0.0
      %1175 = vmatprep.subr.mxu0 0.0
      %1176 = vmatpush1.msra.mxu0 0.0
      %1177 = vmatprep.subr.mxu0 0.0
      %1178 = vmatpush1.msra.mxu0 0.0
      %1179 = vmatprep.subr.mxu0 0.0
      %1180 = vmatpush1.msra.mxu0 0.0
      %1181 = vmatprep.subr.mxu0 0.0
      %1182 = vmatpush1.msra.mxu0 0.0
      %1183 = vmatprep.subr.mxu0 0.0
      %1184 = vmatpush1.msra.mxu0 0.0
      %1185 = vmatprep.subr.mxu0 0.0
      %1186 = vmatpush1.msra.mxu0 0.0
      %1187 = vmatprep.subr.mxu0 0.0
      %1188 = vmatpush1.msra.mxu0 0.0
      %1189 = vmatprep.subr.mxu0 0.0
      %1190 = vmatpush1.msra.mxu0 0.0
      %1191 = vmatprep.subr.mxu0 0.0
      %1192 = vmatpush1.msra.mxu0 0.0
      %1193 = vmatprep.subr.mxu0 0.0
      %1194 = vmatpush1.msra.mxu0 0.0
      %1195 = vmatprep.subr.mxu0 0.0
      %1196 = vmatpush1.msra.mxu0 0.0
      %1197 = vmatprep.subr.mxu0 %v1158
      %1198 = vmatpush1.msra.mxu0 %v1157
      %1199 = vmatprep.subr.mxu0 %v1156
      %1200 = vmatpush1.msra.mxu0 %v1155
      %1201 = vmatprep.subr.mxu0 0.0
      %1202 = vmatpush2.msra.mxu0 0.0
      %1203 = vmatprep.subr.mxu0 0.0
      %1204 = vmatpush2.msra.mxu0 0.0
      %1205 = vmatprep.subr.mxu0 0.0
      %1206 = vmatpush2.msra.mxu0 0.0
      %1207 = vmatprep.subr.mxu0 0.0
      %1208 = vmatpush2.msra.mxu0 0.0
      %1209 = vmatprep.subr.mxu0 0.0
      %1210 = vmatpush2.msra.mxu0 0.0
      %1211 = vmatprep.subr.mxu0 0.0
      %1212 = vmatpush2.msra.mxu0 0.0
      %1213 = vmatprep.subr.mxu0 0.0
      %1214 = vmatpush2.msra.mxu0 0.0
      %1215 = vmatprep.subr.mxu0 0.0
      %1216 = vmatpush2.msra.mxu0 0.0
      %1217 = vmatprep.subr.mxu0 0.0
      %1218 = vmatpush2.msra.mxu0 0.0
      %1219 = vmatprep.subr.mxu0 0.0
      %1220 = vmatpush2.msra.mxu0 0.0
      %1221 = vmatprep.subr.mxu0 0.0
      %1222 = vmatpush2.msra.mxu0 0.0
      %1223 = vmatprep.subr.mxu0 0.0
      %1224 = vmatpush2.msra.mxu0 0.0
      %1225 = vmatprep.subr.mxu0 0.0
      %1226 = vmatpush2.msra.mxu0 0.0
      %1227 = vmatprep.subr.mxu0 0.0
      %1228 = vmatpush2.msra.mxu0 0.0
      %1229 = vmatprep.subr.mxu0 0.0
      %1230 = vmatpush2.msra.mxu0 0.0
      %1231 = vmatprep.subr.mxu0 0.0
      %1232 = vmatpush2.msra.mxu0 0.0
      %1233 = vmatprep.mubr.f32.mxu0 0.0
      %1234 = vmatmul.mubr.f32.gmra.mxu0 %v1167
      %v1235 = vpop.f32.mrf.mxu0
      %v1236 = vadd.f32 %v1164, %v1235
      %v1237 = vpop.f32.mrf.mxu0
      %v1238 = vadd.f32 %v1164, %v1237
      %1239 = vdwg.mxu0
      %v1240 = vmax.f32 %v1236, 0.0
      %v1241 = vmax.f32 %v1238, 0.0
      %v1242 = vld [vmem:[%s2 + $0xd8] sm:$0xff]
      %v1243 = vld [vmem:[%s2 + $0xe0] sm:$0xff]
      %v1244 = vld [vmem:[%s2 + $0xe8] sm:$0xff]
      %v1245 = vld [vmem:[%s2 + $0xf0] sm:$0xff]
      %1247 = vset.pattern.permute.xlu0 0
      %1248 = vperm.xlu0 %1247, %v1244
      %v1249 = vpop.permute.xlu0 %1248
      %1252 = vset.pattern.permute.xlu0 0
      %1253 = vperm.xlu0 %1252, %v1245
      %v1254 = vpop.permute.xlu0 %1253
      %v1257 = vsel %vm470, %v1242, 0
      %v1260 = vsel %vm470, %v1243, 0
      %1262 = vmatprep.subr.mxu0 0.0
      %1263 = vmatpush1.msra.mxu0 0.0
      %1264 = vmatprep.subr.mxu0 0.0
      %1265 = vmatpush1.msra.mxu0 0.0
      %1266 = vmatprep.subr.mxu0 0.0
      %1267 = vmatpush1.msra.mxu0 0.0
      %1268 = vmatprep.subr.mxu0 0.0
      %1269 = vmatpush1.msra.mxu0 0.0
      %1270 = vmatprep.subr.mxu0 0.0
      %1271 = vmatpush1.msra.mxu0 0.0
      %1272 = vmatprep.subr.mxu0 0.0
      %1273 = vmatpush1.msra.mxu0 0.0
      %1274 = vmatprep.subr.mxu0 0.0
      %1275 = vmatpush1.msra.mxu0 0.0
      %1276 = vmatprep.subr.mxu0 0.0
      %1277 = vmatpush1.msra.mxu0 0.0
      %1278 = vmatprep.subr.mxu0 0.0
      %1279 = vmatpush1.msra.mxu0 0.0
      %1280 = vmatprep.subr.mxu0 0.0
      %1281 = vmatpush1.msra.mxu0 0.0
      %1282 = vmatprep.subr.mxu0 0.0
      %1283 = vmatpush1.msra.mxu0 0.0
      %1284 = vmatprep.subr.mxu0 0.0
      %1285 = vmatpush1.msra.mxu0 0.0
      %1286 = vmatprep.subr.mxu0 0.0
      %1287 = vmatpush1.msra.mxu0 0.0
      %1288 = vmatprep.subr.mxu0 0.0
      %1289 = vmatpush1.msra.mxu0 0.0
      %1290 = vmatprep.subr.mxu0 0.0
      %1291 = vmatpush1.msra.mxu0 0.0
      %1292 = vmatprep.subr.mxu0 %v1241
      %1293 = vmatpush1.msra.mxu0 %v1240
      %1294 = vmatprep.subr.mxu0 0.0
      %1295 = vmatpush2.msra.mxu0 0.0
      %1296 = vmatprep.subr.mxu0 0.0
      %1297 = vmatpush2.msra.mxu0 0.0
      %1298 = vmatprep.subr.mxu0 0.0
      %1299 = vmatpush2.msra.mxu0 0.0
      %1300 = vmatprep.subr.mxu0 0.0
      %1301 = vmatpush2.msra.mxu0 0.0
      %1302 = vmatprep.subr.mxu0 0.0
      %1303 = vmatpush2.msra.mxu0 0.0
      %1304 = vmatprep.subr.mxu0 0.0
      %1305 = vmatpush2.msra.mxu0 0.0
      %1306 = vmatprep.subr.mxu0 0.0
      %1307 = vmatpush2.msra.mxu0 0.0
      %1308 = vmatprep.subr.mxu0 0.0
      %1309 = vmatpush2.msra.mxu0 0.0
      %1310 = vmatprep.subr.mxu0 0.0
      %1311 = vmatpush2.msra.mxu0 0.0
      %1312 = vmatprep.subr.mxu0 0.0
      %1313 = vmatpush2.msra.mxu0 0.0
      %1314 = vmatprep.subr.mxu0 0.0
      %1315 = vmatpush2.msra.mxu0 0.0
      %1316 = vmatprep.subr.mxu0 0.0
      %1317 = vmatpush2.msra.mxu0 0.0
      %1318 = vmatprep.subr.mxu0 0.0
      %1319 = vmatpush2.msra.mxu0 0.0
      %1320 = vmatprep.subr.mxu0 0.0
      %1321 = vmatpush2.msra.mxu0 0.0
      %1322 = vmatprep.subr.mxu0 0.0
      %1323 = vmatpush2.msra.mxu0 0.0
      %1324 = vmatprep.subr.mxu0 0.0
      %1325 = vmatpush2.msra.mxu0 0.0
      %1326 = vmatprep.mubr.f32.mxu0 0.0
      %1327 = vmatmul.mubr.f32.gmra.mxu0 %v1257
      %v1328 = vpop.f32.mrf.mxu0
      %v1329 = vadd.f32 %v1249, %v1328
      %v1330 = vpop.f32.mrf.mxu0
      %v1331 = vadd.f32 %v1249, %v1330
      %1332 = vmatprep.mubr.f32.mxu0 0.0
      %1333 = vmatmul.mubr.f32.gmra.mxu0 %v1260
      %v1334 = vpop.f32.mrf.mxu0
      %v1335 = vadd.f32 %v1254, %v1334
      %v1336 = vpop.f32.mrf.mxu0
      %v1337 = vadd.f32 %v1254, %v1336
      %1338 = vdwg.mxu0
      %v1339 = vld [vmem:[%s2 + $0xf8] sm:$0xff]
      %v1340 = vld [vmem:[%s2 + $0x100] sm:$0xff]
      %v1341 = vld [vmem:[%s2 + $0x108] sm:$0xff]
      %v1342 = vld [vmem:[%s2 + $0x110] sm:$0xff]
      %v1344 = vsel %vm379, %v1339, 0
      %v1347 = vsel %vm379, %v1340, 0
      %v1350 = vsel %vm379, %v1341, 0
      %v1353 = vsel %vm379, %v1342, 0
      %1355 = vmatprep.subr.mxu0 0.0
      %1356 = vmatpush1.msra.mxu0 0.0
      %1357 = vmatprep.subr.mxu0 0.0
      %1358 = vmatpush1.msra.mxu0 0.0
      %1359 = vmatprep.subr.mxu0 0.0
      %1360 = vmatpush1.msra.mxu0 0.0
      %1361 = vmatprep.subr.mxu0 0.0
      %1362 = vmatpush1.msra.mxu0 0.0
      %1363 = vmatprep.subr.mxu0 0.0
      %1364 = vmatpush1.msra.mxu0 0.0
      %1365 = vmatprep.subr.mxu0 0.0
      %1366 = vmatpush1.msra.mxu0 0.0
      %1367 = vmatprep.subr.mxu0 0.0
      %1368 = vmatpush1.msra.mxu0 0.0
      %1369 = vmatprep.subr.mxu0 0.0
      %1370 = vmatpush1.msra.mxu0 0.0
      %1371 = vmatprep.subr.mxu0 0.0
      %1372 = vmatpush1.msra.mxu0 0.0
      %1373 = vmatprep.subr.mxu0 0.0
      %1374 = vmatpush1.msra.mxu0 0.0
      %1375 = vmatprep.subr.mxu0 0.0
      %1376 = vmatpush1.msra.mxu0 0.0
      %1377 = vmatprep.subr.mxu0 0.0
      %1378 = vmatpush1.msra.mxu0 0.0
      %1379 = vmatprep.subr.mxu0 0.0
      %1380 = vmatpush1.msra.mxu0 0.0
      %1381 = vmatprep.subr.mxu0 0.0
      %1382 = vmatpush1.msra.mxu0 0.0
      %1383 = vmatprep.subr.mxu0 %v1337
      %1384 = vmatpush1.msra.mxu0 %v1335
      %1385 = vmatprep.subr.mxu0 %v1331
      %1386 = vmatpush1.msra.mxu0 %v1329
      %1387 = vmatprep.subr.mxu0 0.0
      %1388 = vmatpush2.msra.mxu0 0.0
      %1389 = vmatprep.subr.mxu0 0.0
      %1390 = vmatpush2.msra.mxu0 0.0
      %1391 = vmatprep.subr.mxu0 0.0
      %1392 = vmatpush2.msra.mxu0 0.0
      %1393 = vmatprep.subr.mxu0 0.0
      %1394 = vmatpush2.msra.mxu0 0.0
      %1395 = vmatprep.subr.mxu0 0.0
      %1396 = vmatpush2.msra.mxu0 0.0
      %1397 = vmatprep.subr.mxu0 0.0
      %1398 = vmatpush2.msra.mxu0 0.0
      %1399 = vmatprep.subr.mxu0 0.0
      %1400 = vmatpush2.msra.mxu0 0.0
      %1401 = vmatprep.subr.mxu0 0.0
      %1402 = vmatpush2.msra.mxu0 0.0
      %1403 = vmatprep.subr.mxu0 0.0
      %1404 = vmatpush2.msra.mxu0 0.0
      %1405 = vmatprep.subr.mxu0 0.0
      %1406 = vmatpush2.msra.mxu0 0.0
      %1407 = vmatprep.subr.mxu0 0.0
      %1408 = vmatpush2.msra.mxu0 0.0
      %1409 = vmatprep.subr.mxu0 0.0
      %1410 = vmatpush2.msra.mxu0 0.0
      %1411 = vmatprep.subr.mxu0 0.0
      %1412 = vmatpush2.msra.mxu0 0.0
      %1413 = vmatprep.subr.mxu0 0.0
      %1414 = vmatpush2.msra.mxu0 0.0
      %1415 = vmatprep.subr.mxu0 0.0
      %1416 = vmatpush2.msra.mxu0 0.0
      %1417 = vmatprep.subr.mxu0 0.0
      %1418 = vmatpush2.msra.mxu0 0.0
      %1419 = vmatprep.mubr.f32.mxu0 0.0
      %1420 = vmatmul.mubr.f32.gmra.mxu0 %v1344
      %v1421 = vpop.f32.mrf.mxu0
      %v1422 = vadd.f32 0.0, %v1421
      %v1423 = vpop.f32.mrf.mxu0
      %v1424 = vadd.f32 0.0, %v1423
      %1425 = vmatprep.mubr.f32.mxu0 0.0
      %1426 = vmatmul.mubr.f32.gmra.mxu0 %v1347
      %v1427 = vpop.f32.mrf.mxu0
      %v1428 = vadd.f32 0.0, %v1427
      %v1429 = vpop.f32.mrf.mxu0
      %v1430 = vadd.f32 0.0, %v1429
      %1431 = vmatprep.mubr.f32.mxu0 0.0
      %1432 = vmatmul.mubr.f32.gmra.mxu0 %v1350
      %v1433 = vpop.f32.mrf.mxu0
      %v1434 = vadd.f32 0.0, %v1433
      %v1435 = vpop.f32.mrf.mxu0
      %v1436 = vadd.f32 0.0, %v1435
      %1437 = vmatprep.mubr.f32.mxu0 0.0
      %1438 = vmatmul.mubr.f32.gmra.mxu0 %v1353
      %v1439 = vpop.f32.mrf.mxu0
      %v1440 = vadd.f32 0.0, %v1439
      %v1441 = vpop.f32.mrf.mxu0
      %v1442 = vadd.f32 0.0, %v1441
      %1443 = vdwg.mxu0
      %v1444 = vmax.f32 %v1422, 0.0
      %v1445 = vmax.f32 %v1424, 0.0
      %v1446 = vmax.f32 %v1428, 0.0
      %v1447 = vmax.f32 %v1430, 0.0
      %v1448 = vmax.f32 %v1434, 0.0
      %v1449 = vmax.f32 %v1436, 0.0
      %v1450 = vmax.f32 %v1440, 0.0
      %v1451 = vmax.f32 %v1442, 0.0
      %1452 = vst [vmem:[%s225] sm:$0xff] %v1329
      %1453 = vst [vmem:[%s225 + $0x8] sm:$0xff] %v1331
      %1454 = vst [vmem:[%s225 + $0x10] sm:$0xff] %v1335
      %1455 = vst [vmem:[%s225 + $0x18] sm:$0xff] %v1337
      %1456 = vst [vmem:[%s230] sm:$0xff] %v1444
      %1457 = vst [vmem:[%s230 + $0x8] sm:$0xff] %v1445
      %1458 = vst [vmem:[%s230 + $0x10] sm:$0xff] %v1446
      %1459 = vst [vmem:[%s230 + $0x18] sm:$0xff] %v1447
      %1460 = vst [vmem:[%s230 + $0x20] sm:$0xff] %v1448
      %1461 = vst [vmem:[%s230 + $0x28] sm:$0xff] %v1449
      %1462 = vst [vmem:[%s230 + $0x30] sm:$0xff] %v1450
      %1463 = vst [vmem:[%s230 + $0x38] sm:$0xff] %v1451
      %p1464 = scmp.lt.s32.totalorder %s16, 1
      %s1465 = scalar_select %p1464, %s16, 1
      %s1466 = smul.addr %s1465, 4
      %s1467 = smul.addr %s1466, 8
      %s1468 = scalar_lea.vmem %s3, %s1467
      %p1469 = scmp.lt.s32.totalorder %s16, 1
      %s1470 = scalar_select %p1469, %s16, 1
      %s1471 = smul.addr %s1470, 8
      %s1472 = smul.addr %s1471, 8
      %s1473 = scalar_lea.vmem %s4, %s1472
      // Predicated region
      $region33: #{munet_forward.1} parent=31 // pred_check
        %p1474 = pneg %p107
      $region34: #{munet_forward.1} parent=31 // pred_check_branch
        %1476 = sbr.rel (%p1474) target = $region36
      $region35: #{munet_forward.1} parent=31 // pred_region
        _
      $region36: #{munet_forward.1} parent=31 // pred_fallthru
        _
      // Predicated region
      $region37: #{munet_forward.1} parent=31 // pred_check
        %p1477 = pneg %p133
      $region38: #{munet_forward.1} parent=31 // pred_check_branch
        %1479 = sbr.rel (%p1477) target = $region40
      $region39: #{munet_forward.1} parent=31 // pred_region
        _
      $region40: #{munet_forward.1} parent=31 // pred_fallthru
        _
    $region32: #{munet_forward.1} parent=5 // pred_fallthru
      _
    %p1480 = scmp.le.s32.totalorder 2, %s11
    // Predicated region
    $region41: #{munet_forward.1} parent=5 // pred_check
      %p1481 = pneg %p1480
    $region42: #{munet_forward.1} parent=5 // pred_check_branch
      %1483 = sbr.rel (%p1481) target = $region44
    $region43: #{munet_forward.1} parent=5 // pred_region
      %s1484 = ssub.s32 %s11, 2
      // Predicated region
      $region45: #{munet_forward.1} parent=43 // pred_check
        %p1485 = pneg %p113
      $region46: #{munet_forward.1} parent=43 // pred_check_branch
        %1487 = sbr.rel (%p1485) target = $region48
      $region47: #{munet_forward.1} parent=43 // pred_region
        %p1488 = scmp.lt.s32.totalorder %s17, 1
        %s1489 = scalar_select %p1488, %s17, 1
        %s1490 = smul.addr %s1489, 4
        %s1491 = smul.addr %s1490, 8
        %s1492 = scalar_lea.vmem %s3, %s1491
      $region48: #{munet_forward.1} parent=43 // pred_fallthru
        _
      // Predicated region
      $region49: #{munet_forward.1} parent=43 // pred_check
        %p1493 = pneg %p139
      $region50: #{munet_forward.1} parent=43 // pred_check_branch
        %1495 = sbr.rel (%p1493) target = $region52
      $region51: #{munet_forward.1} parent=43 // pred_region
        %p1496 = scmp.lt.s32.totalorder %s17, 1
        %s1497 = scalar_select %p1496, %s17, 1
        %s1498 = smul.addr %s1497, 8
        %s1499 = smul.addr %s1498, 8
        %s1500 = scalar_lea.vmem %s4, %s1499
      $region52: #{munet_forward.1} parent=43 // pred_fallthru
        _
    $region44: #{munet_forward.1} parent=5 // pred_fallthru
      _
  $region6: #{munet_forward.1} parent=0 // loop_footer
    %s15 = sadd.s32 1, %s11
  $region7: #{munet_forward.1} parent=0 // loop_footer_branch
    %10 = sbr.rel target = $region3
  $region8: #{munet_forward.1} parent=0 // loop_exit
    _

</llo_original>
